<compile_context>
chip_gen: v6e
topology: v6e:2x2x1
jax: 0.10.0
libtpu: 0.0.40
codegen_flags: <defaults>
</compile_context>

<pallas_src>
import functools

import jax
import jax.numpy as jnp
from jax.experimental import pallas as pl
from jax.experimental.pallas import tpu as pltpu


def _cdiv(a, b):
    return -(-a // b)


def _round_up(a, b):
    return _cdiv(a, b) * b


def _exact_seg_sums(x, s_mat):
    """Row-segment sums (and broadcast back) of f32 `x` via the MXU.

    `s_mat` is a (W, W) block-diagonal 0/1 bf16 matrix; x @ s_mat sums every `seg`-lane chunk
    of a row and broadcasts that sum back across the chunk.  `x` is split into three exactly
    bf16-representable terms (x == x0 + x1 + x2 up to ~2^-26 relative), so the result is
    f32-accurate independent of how the backend handles f32 matmul precision, while each dot
    is the best-supported bf16 x bf16 -> f32 MXU path.
    """
    x0 = x.astype(jnp.bfloat16)
    r1 = x - x0.astype(jnp.float32)
    x1 = r1.astype(jnp.bfloat16)
    x2 = (r1 - x1.astype(jnp.float32)).astype(jnp.bfloat16)
    dot = lambda a: jnp.dot(a, s_mat, preferred_element_type=jnp.float32)
    return dot(x0) + dot(x1) + dot(x2)


def _message_norm_kernel(scale_ref, feats_ref, msg_ref, out_ref, *, seg):
    """One (tile_rows, W) tile; each W-lane row holds W // seg original rows."""
    msg = msg_ref[...].astype(jnp.float32)
    feats = feats_ref[...].astype(jnp.float32)
    w = msg.shape[-1]
    scale_val = scale_ref[0]                       # scalar, read once from SMEM

    if seg == w:
        # One original row per vector row: plain lane reduction (already lane-dense).
        msg_ss = jnp.sum(msg * msg, axis=-1, keepdims=True)
        feats_ss = jnp.sum(feats * feats, axis=-1, keepdims=True)
    else:
        # Packed rows: segmented reduce+broadcast on the MXU with a block-diagonal 0/1 matrix.
        # Same segment <=> same value of (lane_index & -seg); seg is a power of two here.
        row = jax.lax.broadcasted_iota(jnp.int32, (w, w), 0)
        col = jax.lax.broadcasted_iota(jnp.int32, (w, w), 1)
        s_mat = jnp.where((row & (-seg)) == (col & (-seg)), 1.0, 0.0).astype(jnp.bfloat16)
        msg_ss = _exact_seg_sums(msg * msg, s_mat)
        feats_ss = _exact_seg_sums(feats * feats, s_mat)

    # max(||msg||, 1e-12) == sqrt(max(||msg||^2, 1e-24)); rsqrt/sqrt run on the EUP slot.
    inv_msg = jax.lax.rsqrt(jnp.maximum(msg_ss, 1e-24))
    factor = jnp.sqrt(feats_ss) * inv_msg * scale_val
    out_ref[...] = (msg * factor).astype(out_ref.dtype)


def message_norm(feats, msg, scale, *, max_tile_rows=1024):
    """feats, msg: (N, D); scale: (1,) float32.  Returns (N, D) with msg.dtype."""
    N, D = msg.shape
    assert feats.shape == (N, D)

    if D < 128 and 128 % D == 0:
        pack, width = 128 // D, 128        # pack rows so every vreg row is 128 lanes wide
    else:
        pack, width = 1, D                 # D >= 128 (or awkward): rows are already wide

    rows = _cdiv(N, pack)
    num_tiles = _cdiv(rows, max_tile_rows)
    if num_tiles > 1 and num_tiles % 2:
        num_tiles += 1                     # even number of grid steps keeps both v7x TCs busy
    tile_rows = _round_up(_cdiv(rows, num_tiles), 16)   # sublane-friendly for f32 and bf16
    rows_pad = tile_rows * num_tiles
    n_pad = rows_pad * pack

    def prep(x):
        if n_pad != N:
            # Zero rows are numerically safe: factor -> 0, output rows -> 0 (no NaN/Inf).
            x = jnp.pad(x, ((0, n_pad - N), (0, 0)))
        return x.reshape(rows_pad, width)  # free, row-major preserving reshape

    row_spec = pl.BlockSpec((tile_rows, width), lambda i: (i, 0))

    out_packed = pl.pallas_call(
        functools.partial(_message_norm_kernel, seg=D),
        out_shape=jax.ShapeDtypeStruct((rows_pad, width), msg.dtype),
        grid_spec=pltpu.PrefetchScalarGridSpec(
            num_scalar_prefetch=0,
            grid=(num_tiles,),
            in_specs=[
                pl.BlockSpec(memory_space=pltpu.MemorySpace.SMEM),   # scale (1,)
                row_spec,                                            # feats
                row_spec,                                            # msg
            ],
            out_specs=row_spec,
        ),
        compiler_params=pltpu.CompilerParams(dimension_semantics=("parallel",)),
    )(scale, prep(feats), prep(msg))

    out = out_packed.reshape(n_pad, D)
    return out[:N] if n_pad != N else out


def message_norm_ref(feats, msg, scale):
    """Pure-JAX reference mirroring the PyTorch module (f32 math)."""
    msg32 = msg.astype(jnp.float32)
    feats32 = feats.astype(jnp.float32)
    msg_l2 = jnp.maximum(jnp.linalg.norm(msg32, axis=-1, keepdims=True), 1e-12)
    feats_nrm = jnp.linalg.norm(feats32, axis=-1, keepdims=True)
    return ((msg32 / msg_l2) * feats_nrm * scale[0]).astype(msg.dtype)


if __name__ == "__main__":
    key = jax.random.PRNGKey(0)
    k1, k2, k3, k4, k5, k6 = jax.random.split(key, 6)

    # Case 1: hidden=32 (4 rows packed per 128-lane row), N not tile-aligned -> padding path.
    N1, D1 = 1000, 32
    scale1 = jnp.array([1.0], dtype=jnp.float32)
    feats1 = jax.random.normal(k1, (N1, D1), dtype=jnp.float32)
    msg1 = jax.random.normal(k2, (N1, D1), dtype=jnp.float32)
    out1 = jax.block_until_ready(message_norm(feats1, msg1, scale1))
    ref1 = message_norm_ref(feats1, msg1, scale1)
    assert out1.shape == (N1, D1)
    assert jnp.allclose(out1, ref1, atol=1e-5, rtol=1e-5), "case 1 mismatch vs reference"

    # Case 2: hidden=256 (already lane-dense, un-packed path), non-unit scale.
    N2, D2 = 256, 256
    scale2 = jnp.array([1.5], dtype=jnp.float32)
    feats2 = jax.random.normal(k3, (N2, D2), dtype=jnp.float32)
    msg2 = jax.random.normal(k4, (N2, D2), dtype=jnp.float32)
    out2 = jax.block_until_ready(message_norm(feats2, msg2, scale2))
    ref2 = message_norm_ref(feats2, msg2, scale2)
    assert jnp.allclose(out2, ref2, atol=1e-5, rtol=1e-5), "case 2 mismatch vs reference"

    # Case 3: bf16 inputs, hidden=64 (2 rows packed per 128-lane row); f32 math in-kernel.
    N3, D3 = 512, 64
    scale3 = jnp.array([0.5], dtype=jnp.float32)
    feats3 = jax.random.normal(k5, (N3, D3), dtype=jnp.float32).astype(jnp.bfloat16)
    msg3 = jax.random.normal(k6, (N3, D3), dtype=jnp.float32).astype(jnp.bfloat16)
    out3 = jax.block_until_ready(message_norm(feats3, msg3, scale3))
    ref3 = message_norm_ref(feats3, msg3, scale3)
    assert jnp.allclose(out3.astype(jnp.float32), ref3.astype(jnp.float32),
                        atol=2e-2, rtol=2e-2), "case 3 mismatch vs reference"

    print("KERNEL_OK")
</pallas_src>

<mosaic_0001>
module attributes {stable_mosaic.version = 11 : i64} {
  func.func @_message_norm_kernel(%arg0: i32, %arg1: memref<1xf32, #tpu.memory_space<smem>>, %arg2: memref<256x128xf32, #tpu.memory_space<vmem>>, %arg3: memref<256x128xf32, #tpu.memory_space<vmem>>, %arg4: memref<256x128xf32, #tpu.memory_space<vmem>>) attributes {dimension_semantics = [#tpu.dimension_semantics<parallel>], iteration_bounds = array<i64: 1>, scalar_prefetch = 0 : i64, scratch_operands = 0 : i64, tpu.core_type = #tpu.core_type<tc>, window_params = [{transform_indices = @transform_0, window_bounds = array<i64: 1>}, {transform_indices = @transform_1, window_bounds = array<i64: 256, 128>}, {transform_indices = @transform_2, window_bounds = array<i64: 256, 128>}, {transform_indices = @transform_3, window_bounds = array<i64: 256, 128>}]} {
    %c0 = arith.constant 0 : index
    %c0_0 = arith.constant 0 : index
    %0 = vector.load %arg3[%c0, %c0_0] : memref<256x128xf32, #tpu.memory_space<vmem>>, vector<256x128xf32>
    %c0_1 = arith.constant 0 : index
    %c0_2 = arith.constant 0 : index
    %1 = vector.load %arg2[%c0_1, %c0_2] : memref<256x128xf32, #tpu.memory_space<vmem>>, vector<256x128xf32>
    %c0_3 = arith.constant 0 : index
    %2 = memref.load %arg1[%c0_3] : memref<1xf32, #tpu.memory_space<smem>>
    %3 = tpu.iota {dimensions = array<i32: 0>} : vector<128x128xi32>
    %4 = tpu.iota {dimensions = array<i32: 1>} : vector<128x128xi32>
    %c-32_i32 = arith.constant -32 : i32
    %5 = vector.broadcast %c-32_i32 : i32 to vector<128x128xi32>
    %6 = arith.andi %3, %5 : vector<128x128xi32>
    %c-32_i32_4 = arith.constant -32 : i32
    %7 = vector.broadcast %c-32_i32_4 : i32 to vector<128x128xi32>
    %8 = arith.andi %4, %7 : vector<128x128xi32>
    %9 = arith.cmpi eq, %6, %8 : vector<128x128xi32>
    %cst = arith.constant 1.000000e+00 : f32
    %cst_5 = arith.constant 0.000000e+00 : f32
    %10 = vector.broadcast %cst : f32 to vector<128x128xf32>
    %11 = vector.broadcast %cst_5 : f32 to vector<128x128xf32>
    %12 = arith.select %9, %10, %11 : vector<128x128xi1>, vector<128x128xf32>
    %13 = arith.truncf %12 : vector<128x128xf32> to vector<128x128xbf16>
    %14 = arith.mulf %0, %0 : vector<256x128xf32>
    %15 = arith.truncf %14 : vector<256x128xf32> to vector<256x128xbf16>
    %16 = arith.extf %15 : vector<256x128xbf16> to vector<256x128xf32>
    %17 = arith.subf %14, %16 : vector<256x128xf32>
    %18 = arith.truncf %17 : vector<256x128xf32> to vector<256x128xbf16>
    %19 = arith.extf %18 : vector<256x128xbf16> to vector<256x128xf32>
    %20 = arith.subf %17, %19 : vector<256x128xf32>
    %21 = arith.truncf %20 : vector<256x128xf32> to vector<256x128xbf16>
    %cst_6 = arith.constant dense<0.000000e+00> : vector<256x128xf32>
    %22 = tpu.matmul %15, %13, %cst_6 {dimension_numbers = #tpu.dot_dimension_numbers<[1], [0], [0], [1], [0, 0, 1, 1], [], []>} : vector<256x128xbf16>, vector<128x128xbf16>, vector<256x128xf32> -> vector<256x128xf32>
    %cst_7 = arith.constant dense<0.000000e+00> : vector<256x128xf32>
    %23 = tpu.matmul %18, %13, %cst_7 {dimension_numbers = #tpu.dot_dimension_numbers<[1], [0], [0], [1], [0, 0, 1, 1], [], []>} : vector<256x128xbf16>, vector<128x128xbf16>, vector<256x128xf32> -> vector<256x128xf32>
    %24 = arith.addf %22, %23 : vector<256x128xf32>
    %cst_8 = arith.constant dense<0.000000e+00> : vector<256x128xf32>
    %25 = tpu.matmul %21, %13, %cst_8 {dimension_numbers = #tpu.dot_dimension_numbers<[1], [0], [0], [1], [0, 0, 1, 1], [], []>} : vector<256x128xbf16>, vector<128x128xbf16>, vector<256x128xf32> -> vector<256x128xf32>
    %26 = arith.addf %24, %25 : vector<256x128xf32>
    %27 = arith.mulf %1, %1 : vector<256x128xf32>
    %28 = arith.truncf %27 : vector<256x128xf32> to vector<256x128xbf16>
    %29 = arith.extf %28 : vector<256x128xbf16> to vector<256x128xf32>
    %30 = arith.subf %27, %29 : vector<256x128xf32>
    %31 = arith.truncf %30 : vector<256x128xf32> to vector<256x128xbf16>
    %32 = arith.extf %31 : vector<256x128xbf16> to vector<256x128xf32>
    %33 = arith.subf %30, %32 : vector<256x128xf32>
    %34 = arith.truncf %33 : vector<256x128xf32> to vector<256x128xbf16>
    %cst_9 = arith.constant dense<0.000000e+00> : vector<256x128xf32>
    %35 = tpu.matmul %28, %13, %cst_9 {dimension_numbers = #tpu.dot_dimension_numbers<[1], [0], [0], [1], [0, 0, 1, 1], [], []>} : vector<256x128xbf16>, vector<128x128xbf16>, vector<256x128xf32> -> vector<256x128xf32>
    %cst_10 = arith.constant dense<0.000000e+00> : vector<256x128xf32>
    %36 = tpu.matmul %31, %13, %cst_10 {dimension_numbers = #tpu.dot_dimension_numbers<[1], [0], [0], [1], [0, 0, 1, 1], [], []>} : vector<256x128xbf16>, vector<128x128xbf16>, vector<256x128xf32> -> vector<256x128xf32>
    %37 = arith.addf %35, %36 : vector<256x128xf32>
    %cst_11 = arith.constant dense<0.000000e+00> : vector<256x128xf32>
    %38 = tpu.matmul %34, %13, %cst_11 {dimension_numbers = #tpu.dot_dimension_numbers<[1], [0], [0], [1], [0, 0, 1, 1], [], []>} : vector<256x128xbf16>, vector<128x128xbf16>, vector<256x128xf32> -> vector<256x128xf32>
    %39 = arith.addf %37, %38 : vector<256x128xf32>
    %cst_12 = arith.constant 1.000000e-24 : f32
    %40 = vector.broadcast %cst_12 : f32 to vector<256x128xf32>
    %41 = arith.maximumf %26, %40 : vector<256x128xf32>
    %42 = math.rsqrt %41 : vector<256x128xf32>
    %43 = math.sqrt %39 : vector<256x128xf32>
    %44 = arith.mulf %43, %42 : vector<256x128xf32>
    %45 = vector.broadcast %2 : f32 to vector<256x128xf32>
    %46 = arith.mulf %44, %45 : vector<256x128xf32>
    %47 = arith.mulf %0, %46 : vector<256x128xf32>
    %c0_13 = arith.constant 0 : index
    %c0_14 = arith.constant 0 : index
    %48 = vector.load %arg4[%c0_13, %c0_14] : memref<256x128xf32, #tpu.memory_space<vmem>>, vector<256x128xf32>
    tpu.vector_store %arg4[%c0_13, %c0_14], %47 {strides = array<i32>} : memref<256x128xf32, #tpu.memory_space<vmem>>, vector<256x128xf32>,
    return
  }
  func.func @transform_0(%arg0: i32) -> i32 {
    %c0_i32 = arith.constant 0 : i32
    %c0_i32_0 = arith.constant 0 : i32
    return %c0_i32 : i32
  }
  func.func @transform_1(%arg0: i32) -> (i32, i32) {
    %c0_i32 = arith.constant 0 : i32
    %c0_i32_0 = arith.constant 0 : i32
    return %arg0, %c0_i32 : i32, i32
  }
  func.func @transform_2(%arg0: i32) -> (i32, i32) {
    %c0_i32 = arith.constant 0 : i32
    %c0_i32_0 = arith.constant 0 : i32
    return %arg0, %c0_i32 : i32, i32
  }
  func.func @transform_3(%arg0: i32) -> (i32, i32) {
    %c0_i32 = arith.constant 0 : i32
    %c0_i32_0 = arith.constant 0 : i32
    return %arg0, %c0_i32 : i32, i32
  }
}

</mosaic_0001>

<llo_original>
// kernel: tpu_custom_call.1
$region0: #{tpu_custom_call.1}
  #allocation0 [shape = 'u32[]', space=smem, size = 0x4, offset = 0x4, fixed_abs, tag = 'smem constant byte address 0x4 - core index']
  #allocation1 [shape = 'u32[144,128]{1,0:T(1,128)}', space=vmem, size = 0x12000, scoped, tag = 'internal scratch']
  #allocation2 [shape = 'f32[1]{0:T(128)S(6)}', space=smem, size = 0x200, scoped, tag = 'scoped memory for tpu_custom_call.1']
  %s0 = inlined_call_operand.<no memory space> [shape: f32[1], index: 0, kind: input, shape index: {}]
  %s1 = inlined_call_operand.hbm [shape: f32[256,128], index: 1, kind: input, shape index: {}]
  %s2 = inlined_call_operand.hbm [shape: f32[256,128], index: 2, kind: input, shape index: {}]
  %s3 = inlined_call_operand.hbm [shape: f32[256,128], index: 3, kind: output, shape index: {}]
  %s4 = sld [smem:[#allocation0]]
  $region30: #{tpu_custom_call.1} parent=0
    _
  %s6 = ssub.s32 1, %s4
  %s7 = scalar_select 0, %s6, %s4
  %8 = sst [smem:[#allocation2]] %s0
  $region1: #{tpu_custom_call.1} parent=0
    #allocation3 [shape = 'u8[131072]{0}', space=vmem, size = 0x20000, scoped, tag = 'input window, operand 1, single buffered']
    #allocation4 [shape = 's32[1]{0}', space=sflag, size = 0x4, scoped, tag = 'scoped memory for tpu_custom_call.1']
    #allocation5 [shape = 's32[1]{0}', space=sflag, size = 0x4, scoped, tag = 'scoped memory for tpu_custom_call.1']
    #allocation6 [shape = 'u8[131072]{0}', space=vmem, size = 0x20000, scoped, tag = 'input window, operand 2, single buffered']
    #allocation7 [shape = 's32[1]{0}', space=sflag, size = 0x4, scoped, tag = 'scoped memory for tpu_custom_call.1']
    #allocation8 [shape = 'u8[131072]{0}', space=vmem, size = 0x20000, scoped, tag = 'output window, operand 0, single buffered']
    %9 = vsyncpa [#allocation4], 0
    %10 = vsyncpa [#allocation7], 0
    %11 = vsyncpa [#allocation5], 0
    // Predicated region
    $region2: #{tpu_custom_call.1} parent=1 // pred_check
      _
    $region3: #{tpu_custom_call.1} parent=1 // pred_check_branch
      %13 = sbr.rel (0) target = $region5
    $region4: #{tpu_custom_call.1} parent=1 // pred_region
      _
    $region5: #{tpu_custom_call.1} parent=1 // pred_fallthru
      _
    // Predicated region
    $region6: #{tpu_custom_call.1} parent=1 // pred_check
      _
    $region7: #{tpu_custom_call.1} parent=1 // pred_check_branch
      %15 = sbr.rel (0) target = $region9
    $region8: #{tpu_custom_call.1} parent=1 // pred_region
      %s17 = ssub.s32 4096, 4096
      %18 = vsyncadd [#allocation4], %s17
      %s19 = sshll.u32 [#allocation3], 4
      %s20 = int_to_ptr.vmem [resolvable:$true] %s19
      %25 = dma.hbm_to_vmem [thread:$0]  %s1, 4096, %s20, [#allocation4], 128, 128, 8
    $region9: #{tpu_custom_call.1} parent=1 // pred_fallthru
      _
    // Predicated region
    $region10: #{tpu_custom_call.1} parent=1 // pred_check
      _
    $region11: #{tpu_custom_call.1} parent=1 // pred_check_branch
      %27 = sbr.rel (0) target = $region13
    $region12: #{tpu_custom_call.1} parent=1 // pred_region
      %s29 = ssub.s32 4096, 4096
      %30 = vsyncadd [#allocation7], %s29
      %s31 = sshll.u32 [#allocation6], 4
      %s32 = int_to_ptr.vmem [resolvable:$true] %s31
      %37 = dma.hbm_to_vmem [thread:$0]  %s2, 4096, %s32, [#allocation7], 128, 128, 8
    $region13: #{tpu_custom_call.1} parent=1 // pred_fallthru
      _
    // Predicated region
    $region14: #{tpu_custom_call.1} parent=1 // pred_check
      _
    $region15: #{tpu_custom_call.1} parent=1 // pred_check_branch
      %39 = sbr.rel (0) target = $region17
    $region16: #{tpu_custom_call.1} parent=1 // pred_region
      %40 = dma.done [#allocation4], 4096
    $region17: #{tpu_custom_call.1} parent=1 // pred_fallthru
      _
    // Predicated region
    $region18: #{tpu_custom_call.1} parent=1 // pred_check
      _
    $region19: #{tpu_custom_call.1} parent=1 // pred_check_branch
      %42 = sbr.rel (0) target = $region21
    $region20: #{tpu_custom_call.1} parent=1 // pred_region
      %43 = dma.done [#allocation7], 4096
    $region21: #{tpu_custom_call.1} parent=1 // pred_fallthru
      _
    %v45 = vld [vmem:[#allocation6] sm:$0xff]
    %v46 = vld [vmem:[#allocation6 + $0x8] sm:$0xff]
    %v47 = vld [vmem:[#allocation6 + $0x10] sm:$0xff]
    %v48 = vld [vmem:[#allocation6 + $0x18] sm:$0xff]
    %v49 = vld [vmem:[#allocation6 + $0x20] sm:$0xff]
    %v50 = vld [vmem:[#allocation6 + $0x28] sm:$0xff]
    %v51 = vld [vmem:[#allocation6 + $0x30] sm:$0xff]
    %v52 = vld [vmem:[#allocation6 + $0x38] sm:$0xff]
    %v53 = vld [vmem:[#allocation6 + $0x40] sm:$0xff]
    %v54 = vld [vmem:[#allocation6 + $0x48] sm:$0xff]
    %v55 = vld [vmem:[#allocation6 + $0x50] sm:$0xff]
    %v56 = vld [vmem:[#allocation6 + $0x58] sm:$0xff]
    %v57 = vld [vmem:[#allocation6 + $0x60] sm:$0xff]
    %v58 = vld [vmem:[#allocation6 + $0x68] sm:$0xff]
    %v59 = vld [vmem:[#allocation6 + $0x70] sm:$0xff]
    %v60 = vld [vmem:[#allocation6 + $0x78] sm:$0xff]
    %v61 = vld [vmem:[#allocation6 + $0x80] sm:$0xff]
    %v62 = vld [vmem:[#allocation6 + $0x88] sm:$0xff]
    %v63 = vld [vmem:[#allocation6 + $0x90] sm:$0xff]
    %v64 = vld [vmem:[#allocation6 + $0x98] sm:$0xff]
    %v65 = vld [vmem:[#allocation6 + $0xa0] sm:$0xff]
    %v66 = vld [vmem:[#allocation6 + $0xa8] sm:$0xff]
    %v67 = vld [vmem:[#allocation6 + $0xb0] sm:$0xff]
    %v68 = vld [vmem:[#allocation6 + $0xb8] sm:$0xff]
    %v69 = vld [vmem:[#allocation6 + $0xc0] sm:$0xff]
    %v70 = vld [vmem:[#allocation6 + $0xc8] sm:$0xff]
    %v71 = vld [vmem:[#allocation6 + $0xd0] sm:$0xff]
    %v72 = vld [vmem:[#allocation6 + $0xd8] sm:$0xff]
    %v73 = vld [vmem:[#allocation6 + $0xe0] sm:$0xff]
    %v74 = vld [vmem:[#allocation6 + $0xe8] sm:$0xff]
    %v75 = vld [vmem:[#allocation6 + $0xf0] sm:$0xff]
    %v76 = vld [vmem:[#allocation6 + $0xf8] sm:$0xff]
    %v77 = vld [vmem:[#allocation3] sm:$0xff]
    %v78 = vld [vmem:[#allocation3 + $0x8] sm:$0xff]
    %v79 = vld [vmem:[#allocation3 + $0x10] sm:$0xff]
    %v80 = vld [vmem:[#allocation3 + $0x18] sm:$0xff]
    %v81 = vld [vmem:[#allocation3 + $0x20] sm:$0xff]
    %v82 = vld [vmem:[#allocation3 + $0x28] sm:$0xff]
    %v83 = vld [vmem:[#allocation3 + $0x30] sm:$0xff]
    %v84 = vld [vmem:[#allocation3 + $0x38] sm:$0xff]
    %v85 = vld [vmem:[#allocation3 + $0x40] sm:$0xff]
    %v86 = vld [vmem:[#allocation3 + $0x48] sm:$0xff]
    %v87 = vld [vmem:[#allocation3 + $0x50] sm:$0xff]
    %v88 = vld [vmem:[#allocation3 + $0x58] sm:$0xff]
    %v89 = vld [vmem:[#allocation3 + $0x60] sm:$0xff]
    %v90 = vld [vmem:[#allocation3 + $0x68] sm:$0xff]
    %v91 = vld [vmem:[#allocation3 + $0x70] sm:$0xff]
    %v92 = vld [vmem:[#allocation3 + $0x78] sm:$0xff]
    %v93 = vld [vmem:[#allocation3 + $0x80] sm:$0xff]
    %v94 = vld [vmem:[#allocation3 + $0x88] sm:$0xff]
    %v95 = vld [vmem:[#allocation3 + $0x90] sm:$0xff]
    %v96 = vld [vmem:[#allocation3 + $0x98] sm:$0xff]
    %v97 = vld [vmem:[#allocation3 + $0xa0] sm:$0xff]
    %v98 = vld [vmem:[#allocation3 + $0xa8] sm:$0xff]
    %v99 = vld [vmem:[#allocation3 + $0xb0] sm:$0xff]
    %v100 = vld [vmem:[#allocation3 + $0xb8] sm:$0xff]
    %v101 = vld [vmem:[#allocation3 + $0xc0] sm:$0xff]
    %v102 = vld [vmem:[#allocation3 + $0xc8] sm:$0xff]
    %v103 = vld [vmem:[#allocation3 + $0xd0] sm:$0xff]
    %v104 = vld [vmem:[#allocation3 + $0xd8] sm:$0xff]
    %v105 = vld [vmem:[#allocation3 + $0xe0] sm:$0xff]
    %v106 = vld [vmem:[#allocation3 + $0xe8] sm:$0xff]
    %v107 = vld [vmem:[#allocation3 + $0xf0] sm:$0xff]
    %v108 = vld [vmem:[#allocation3 + $0xf8] sm:$0xff]
    %s109 = sld [smem:[#allocation2]]
    %v110 = vlaneseq
    %v111 = vshrl.u32 %v110, 7
    %v112 = vadd.s32 %v111, 8
    %v113 = vadd.s32 %v111, 16
    %v114 = vadd.s32 %v111, 24
    %v115 = vadd.s32 %v111, 32
    %v116 = vadd.s32 %v111, 40
    %v117 = vadd.s32 %v111, 48
    %v118 = vadd.s32 %v111, 56
    %v119 = vadd.s32 %v111, 64
    %v120 = vadd.s32 %v111, 72
    %v121 = vadd.s32 %v111, 80
    %v122 = vadd.s32 %v111, 88
    %v123 = vadd.s32 %v111, 96
    %v124 = vadd.s32 %v111, 104
    %v125 = vadd.s32 %v111, 112
    %v126 = vadd.s32 %v111, 120
    %v127 = vlaneseq
    %v128 = vand.u32 %v127, 127
    %v129 = vand.u32 %v111, 4294967264
    %v130 = vand.u32 %v112, 4294967264
    %v131 = vand.u32 %v113, 4294967264
    %v132 = vand.u32 %v114, 4294967264
    %v133 = vand.u32 %v115, 4294967264
    %v134 = vand.u32 %v116, 4294967264
    %v135 = vand.u32 %v117, 4294967264
    %v136 = vand.u32 %v118, 4294967264
    %v137 = vand.u32 %v119, 4294967264
    %v138 = vand.u32 %v120, 4294967264
    %v139 = vand.u32 %v121, 4294967264
    %v140 = vand.u32 %v122, 4294967264
    %v141 = vand.u32 %v123, 4294967264
    %v142 = vand.u32 %v124, 4294967264
    %v143 = vand.u32 %v125, 4294967264
    %v144 = vand.u32 %v126, 4294967264
    %v145 = vand.u32 %v128, 4294967264
    %vm146 = vcmp.eq.s32.totalorder %v129, %v145
    %vm147 = vcmp.eq.s32.totalorder %v130, %v145
    %vm148 = vcmp.eq.s32.totalorder %v131, %v145
    %vm149 = vcmp.eq.s32.totalorder %v132, %v145
    %vm150 = vcmp.eq.s32.totalorder %v133, %v145
    %vm151 = vcmp.eq.s32.totalorder %v134, %v145
    %vm152 = vcmp.eq.s32.totalorder %v135, %v145
    %vm153 = vcmp.eq.s32.totalorder %v136, %v145
    %vm154 = vcmp.eq.s32.totalorder %v137, %v145
    %vm155 = vcmp.eq.s32.totalorder %v138, %v145
    %vm156 = vcmp.eq.s32.totalorder %v139, %v145
    %vm157 = vcmp.eq.s32.totalorder %v140, %v145
    %vm158 = vcmp.eq.s32.totalorder %v141, %v145
    %vm159 = vcmp.eq.s32.totalorder %v142, %v145
    %vm160 = vcmp.eq.s32.totalorder %v143, %v145
    %vm161 = vcmp.eq.s32.totalorder %v144, %v145
    %v162 = vsel %vm146, 1.0, 0.0
    %v163 = vsel %vm147, 1.0, 0.0
    %v164 = vsel %vm148, 1.0, 0.0
    %v165 = vsel %vm149, 1.0, 0.0
    %v166 = vsel %vm150, 1.0, 0.0
    %v167 = vsel %vm151, 1.0, 0.0
    %v168 = vsel %vm152, 1.0, 0.0
    %v169 = vsel %vm153, 1.0, 0.0
    %v170 = vsel %vm154, 1.0, 0.0
    %v171 = vsel %vm155, 1.0, 0.0
    %v172 = vsel %vm156, 1.0, 0.0
    %v173 = vsel %vm157, 1.0, 0.0
    %v174 = vsel %vm158, 1.0, 0.0
    %v175 = vsel %vm159, 1.0, 0.0
    %v176 = vsel %vm160, 1.0, 0.0
    %v177 = vsel %vm161, 1.0, 0.0
    %v178 = vpack.c.bf16 %v163, %v162
    %v179 = vpack.c.bf16 %v165, %v164
    %v180 = vpack.c.bf16 %v167, %v166
    %v181 = vpack.c.bf16 %v169, %v168
    %v182 = vpack.c.bf16 %v171, %v170
    %v183 = vpack.c.bf16 %v173, %v172
    %v184 = vpack.c.bf16 %v175, %v174
    %v185 = vpack.c.bf16 %v177, %v176
    %v186 = vmul.f32 %v45, %v45
    %v187 = vmul.f32 %v46, %v46
    %v188 = vmul.f32 %v47, %v47
    %v189 = vmul.f32 %v48, %v48
    %v190 = vmul.f32 %v49, %v49
    %v191 = vmul.f32 %v50, %v50
    %v192 = vmul.f32 %v51, %v51
    %v193 = vmul.f32 %v52, %v52
    %v194 = vmul.f32 %v53, %v53
    %v195 = vmul.f32 %v54, %v54
    %v196 = vmul.f32 %v55, %v55
    %v197 = vmul.f32 %v56, %v56
    %v198 = vmul.f32 %v57, %v57
    %v199 = vmul.f32 %v58, %v58
    %v200 = vmul.f32 %v59, %v59
    %v201 = vmul.f32 %v60, %v60
    %v202 = vmul.f32 %v61, %v61
    %v203 = vmul.f32 %v62, %v62
    %v204 = vmul.f32 %v63, %v63
    %v205 = vmul.f32 %v64, %v64
    %v206 = vmul.f32 %v65, %v65
    %v207 = vmul.f32 %v66, %v66
    %v208 = vmul.f32 %v67, %v67
    %v209 = vmul.f32 %v68, %v68
    %v210 = vmul.f32 %v69, %v69
    %v211 = vmul.f32 %v70, %v70
    %v212 = vmul.f32 %v71, %v71
    %v213 = vmul.f32 %v72, %v72
    %v214 = vmul.f32 %v73, %v73
    %v215 = vmul.f32 %v74, %v74
    %v216 = vmul.f32 %v75, %v75
    %v217 = vmul.f32 %v76, %v76
    %v218 = vpack.c.bf16 %v187, %v186
    %v219 = vpack.c.bf16 %v189, %v188
    %v220 = vpack.c.bf16 %v191, %v190
    %v221 = vpack.c.bf16 %v193, %v192
    %v222 = vpack.c.bf16 %v195, %v194
    %v223 = vpack.c.bf16 %v197, %v196
    %v224 = vpack.c.bf16 %v199, %v198
    %v225 = vpack.c.bf16 %v201, %v200
    %v226 = vpack.c.bf16 %v203, %v202
    %v227 = vpack.c.bf16 %v205, %v204
    %v228 = vpack.c.bf16 %v207, %v206
    %v229 = vpack.c.bf16 %v209, %v208
    %v230 = vpack.c.bf16 %v211, %v210
    %v231 = vpack.c.bf16 %v213, %v212
    %v232 = vpack.c.bf16 %v215, %v214
    %v233 = vpack.c.bf16 %v217, %v216
    %v234 = vunpack.c.l.bf16 %v218
    %v235 = vunpack.c.h.bf16 %v218
    %v236 = vunpack.c.l.bf16 %v219
    %v237 = vunpack.c.h.bf16 %v219
    %v238 = vunpack.c.l.bf16 %v220
    %v239 = vunpack.c.h.bf16 %v220
    %v240 = vunpack.c.l.bf16 %v221
    %v241 = vunpack.c.h.bf16 %v221
    %v242 = vunpack.c.l.bf16 %v222
    %v243 = vunpack.c.h.bf16 %v222
    %v244 = vunpack.c.l.bf16 %v223
    %v245 = vunpack.c.h.bf16 %v223
    %v246 = vunpack.c.l.bf16 %v224
    %v247 = vunpack.c.h.bf16 %v224
    %v248 = vunpack.c.l.bf16 %v225
    %v249 = vunpack.c.h.bf16 %v225
    %v250 = vunpack.c.l.bf16 %v226
    %v251 = vunpack.c.h.bf16 %v226
    %v252 = vunpack.c.l.bf16 %v227
    %v253 = vunpack.c.h.bf16 %v227
    %v254 = vunpack.c.l.bf16 %v228
    %v255 = vunpack.c.h.bf16 %v228
    %v256 = vunpack.c.l.bf16 %v229
    %v257 = vunpack.c.h.bf16 %v229
    %v258 = vunpack.c.l.bf16 %v230
    %v259 = vunpack.c.h.bf16 %v230
    %v260 = vunpack.c.l.bf16 %v231
    %v261 = vunpack.c.h.bf16 %v231
    %v262 = vunpack.c.l.bf16 %v232
    %v263 = vunpack.c.h.bf16 %v232
    %v264 = vunpack.c.l.bf16 %v233
    %v265 = vunpack.c.h.bf16 %v233
    %v266 = vsub.f32 %v186, %v234
    %v267 = vsub.f32 %v187, %v235
    %v268 = vsub.f32 %v188, %v236
    %v269 = vsub.f32 %v189, %v237
    %v270 = vsub.f32 %v190, %v238
    %v271 = vsub.f32 %v191, %v239
    %v272 = vsub.f32 %v192, %v240
    %v273 = vsub.f32 %v193, %v241
    %v274 = vsub.f32 %v194, %v242
    %v275 = vsub.f32 %v195, %v243
    %v276 = vsub.f32 %v196, %v244
    %v277 = vsub.f32 %v197, %v245
    %v278 = vsub.f32 %v198, %v246
    %v279 = vsub.f32 %v199, %v247
    %v280 = vsub.f32 %v200, %v248
    %v281 = vsub.f32 %v201, %v249
    %v282 = vsub.f32 %v202, %v250
    %v283 = vsub.f32 %v203, %v251
    %v284 = vsub.f32 %v204, %v252
    %v285 = vsub.f32 %v205, %v253
    %v286 = vsub.f32 %v206, %v254
    %v287 = vsub.f32 %v207, %v255
    %v288 = vsub.f32 %v208, %v256
    %v289 = vsub.f32 %v209, %v257
    %v290 = vsub.f32 %v210, %v258
    %v291 = vsub.f32 %v211, %v259
    %v292 = vsub.f32 %v212, %v260
    %v293 = vsub.f32 %v213, %v261
    %v294 = vsub.f32 %v214, %v262
    %v295 = vsub.f32 %v215, %v263
    %v296 = vsub.f32 %v216, %v264
    %v297 = vsub.f32 %v217, %v265
    %v298 = vpack.c.bf16 %v267, %v266
    %v299 = vpack.c.bf16 %v269, %v268
    %v300 = vpack.c.bf16 %v271, %v270
    %v301 = vpack.c.bf16 %v273, %v272
    %v302 = vpack.c.bf16 %v275, %v274
    %v303 = vpack.c.bf16 %v277, %v276
    %v304 = vpack.c.bf16 %v279, %v278
    %v305 = vpack.c.bf16 %v281, %v280
    %v306 = vpack.c.bf16 %v283, %v282
    %v307 = vpack.c.bf16 %v285, %v284
    %v308 = vpack.c.bf16 %v287, %v286
    %v309 = vpack.c.bf16 %v289, %v288
    %v310 = vpack.c.bf16 %v291, %v290
    %v311 = vpack.c.bf16 %v293, %v292
    %v312 = vpack.c.bf16 %v295, %v294
    %v313 = vpack.c.bf16 %v297, %v296
    %v314 = vunpack.c.l.bf16 %v298
    %v315 = vunpack.c.h.bf16 %v298
    %v316 = vunpack.c.l.bf16 %v299
    %v317 = vunpack.c.h.bf16 %v299
    %v318 = vunpack.c.l.bf16 %v300
    %v319 = vunpack.c.h.bf16 %v300
    %v320 = vunpack.c.l.bf16 %v301
    %v321 = vunpack.c.h.bf16 %v301
    %v322 = vunpack.c.l.bf16 %v302
    %v323 = vunpack.c.h.bf16 %v302
    %v324 = vunpack.c.l.bf16 %v303
    %v325 = vunpack.c.h.bf16 %v303
    %v326 = vunpack.c.l.bf16 %v304
    %v327 = vunpack.c.h.bf16 %v304
    %v328 = vunpack.c.l.bf16 %v305
    %v329 = vunpack.c.h.bf16 %v305
    %v330 = vunpack.c.l.bf16 %v306
    %v331 = vunpack.c.h.bf16 %v306
    %v332 = vunpack.c.l.bf16 %v307
    %v333 = vunpack.c.h.bf16 %v307
    %v334 = vunpack.c.l.bf16 %v308
    %v335 = vunpack.c.h.bf16 %v308
    %v336 = vunpack.c.l.bf16 %v309
    %v337 = vunpack.c.h.bf16 %v309
    %v338 = vunpack.c.l.bf16 %v310
    %v339 = vunpack.c.h.bf16 %v310
    %v340 = vunpack.c.l.bf16 %v311
    %v341 = vunpack.c.h.bf16 %v311
    %v342 = vunpack.c.l.bf16 %v312
    %v343 = vunpack.c.h.bf16 %v312
    %v344 = vunpack.c.l.bf16 %v313
    %v345 = vunpack.c.h.bf16 %v313
    %v346 = vsub.f32 %v266, %v314
    %v347 = vsub.f32 %v267, %v315
    %v348 = vsub.f32 %v268, %v316
    %v349 = vsub.f32 %v269, %v317
    %v350 = vsub.f32 %v270, %v318
    %v351 = vsub.f32 %v271, %v319
    %v352 = vsub.f32 %v272, %v320
    %v353 = vsub.f32 %v273, %v321
    %v354 = vsub.f32 %v274, %v322
    %v355 = vsub.f32 %v275, %v323
    %v356 = vsub.f32 %v276, %v324
    %v357 = vsub.f32 %v277, %v325
    %v358 = vsub.f32 %v278, %v326
    %v359 = vsub.f32 %v279, %v327
    %v360 = vsub.f32 %v280, %v328
    %v361 = vsub.f32 %v281, %v329
    %v362 = vsub.f32 %v282, %v330
    %v363 = vsub.f32 %v283, %v331
    %v364 = vsub.f32 %v284, %v332
    %v365 = vsub.f32 %v285, %v333
    %v366 = vsub.f32 %v286, %v334
    %v367 = vsub.f32 %v287, %v335
    %v368 = vsub.f32 %v288, %v336
    %v369 = vsub.f32 %v289, %v337
    %v370 = vsub.f32 %v290, %v338
    %v371 = vsub.f32 %v291, %v339
    %v372 = vsub.f32 %v292, %v340
    %v373 = vsub.f32 %v293, %v341
    %v374 = vsub.f32 %v294, %v342
    %v375 = vsub.f32 %v295, %v343
    %v376 = vsub.f32 %v296, %v344
    %v377 = vsub.f32 %v297, %v345
    %v378 = vpack.c.bf16 %v347, %v346
    %v379 = vpack.c.bf16 %v349, %v348
    %v380 = vpack.c.bf16 %v351, %v350
    %v381 = vpack.c.bf16 %v353, %v352
    %v382 = vpack.c.bf16 %v355, %v354
    %v383 = vpack.c.bf16 %v357, %v356
    %v384 = vpack.c.bf16 %v359, %v358
    %v385 = vpack.c.bf16 %v361, %v360
    %v386 = vpack.c.bf16 %v363, %v362
    %v387 = vpack.c.bf16 %v365, %v364
    %v388 = vpack.c.bf16 %v367, %v366
    %v389 = vpack.c.bf16 %v369, %v368
    %v390 = vpack.c.bf16 %v371, %v370
    %v391 = vpack.c.bf16 %v373, %v372
    %v392 = vpack.c.bf16 %v375, %v374
    %v393 = vpack.c.bf16 %v377, %v376
    %394 = vmatprep.subr.bf16.mxu0 0
    %395 = vmatpush1.bf16.msra.mxu0 %v185
    %396 = vmatprep.subr.bf16.mxu0 0
    %397 = vmatpush1.bf16.msra.mxu0 %v184
    %398 = vmatprep.subr.bf16.mxu0 0
    %399 = vmatpush1.bf16.msra.mxu0 %v183
    %400 = vmatprep.subr.bf16.mxu0 0
    %401 = vmatpush1.bf16.msra.mxu0 %v182
    %402 = vmatprep.subr.bf16.mxu0 0
    %403 = vmatpush1.bf16.msra.mxu0 %v181
    %404 = vmatprep.subr.bf16.mxu0 0
    %405 = vmatpush1.bf16.msra.mxu0 %v180
    %406 = vmatprep.subr.bf16.mxu0 0
    %407 = vmatpush1.bf16.msra.mxu0 %v179
    %408 = vmatprep.subr.bf16.mxu0 0
    %409 = vmatpush1.bf16.msra.mxu0 %v178
    %410 = vmatprep.subr.bf16.mxu0 0
    %411 = vmatpush2.bf16.msra.mxu0 0
    %412 = vmatprep.subr.bf16.mxu0 0
    %413 = vmatpush2.bf16.msra.mxu0 0
    %414 = vmatprep.subr.bf16.mxu0 0
    %415 = vmatpush2.bf16.msra.mxu0 0
    %416 = vmatprep.subr.bf16.mxu0 0
    %417 = vmatpush2.bf16.msra.mxu0 0
    %418 = vmatprep.subr.bf16.mxu0 0
    %419 = vmatpush2.bf16.msra.mxu0 0
    %420 = vmatprep.subr.bf16.mxu0 0
    %421 = vmatpush2.bf16.msra.mxu0 0
    %422 = vmatprep.subr.bf16.mxu0 0
    %423 = vmatpush2.bf16.msra.mxu0 0
    %424 = vmatprep.subr.bf16.mxu0 0
    %425 = vmatpush2.bf16.msra.mxu0 0
    %426 = vmatprep.mubr.bf16.mxu0 0
    %427 = vmatmul.mubr.bf16.gmra.mxu0 %v298
    %v428 = vpop.f32.mrf.mxu0
    %v429 = vadd.f32 0.0, %v428
    %v430 = vpop.f32.mrf.mxu0
    %v431 = vpop.f32.mrf.mxu0
    %v432 = vadd.f32 0.0, %v431
    %v433 = vpop.f32.mrf.mxu0
    %434 = vmatprep.mubr.bf16.mxu0 0
    %435 = vmatmul.mubr.bf16.gmra.mxu0 %v299
    %v436 = vpop.f32.mrf.mxu0
    %v437 = vadd.f32 0.0, %v436
    %v438 = vpop.f32.mrf.mxu0
    %v439 = vpop.f32.mrf.mxu0
    %v440 = vadd.f32 0.0, %v439
    %v441 = vpop.f32.mrf.mxu0
    %442 = vmatprep.mubr.bf16.mxu0 0
    %443 = vmatmul.mubr.bf16.gmra.mxu0 %v300
    %v444 = vpop.f32.mrf.mxu0
    %v445 = vadd.f32 0.0, %v444
    %v446 = vpop.f32.mrf.mxu0
    %v447 = vpop.f32.mrf.mxu0
    %v448 = vadd.f32 0.0, %v447
    %v449 = vpop.f32.mrf.mxu0
    %450 = vmatprep.mubr.bf16.mxu0 0
    %451 = vmatmul.mubr.bf16.gmra.mxu0 %v301
    %v452 = vpop.f32.mrf.mxu0
    %v453 = vadd.f32 0.0, %v452
    %v454 = vpop.f32.mrf.mxu0
    %v455 = vpop.f32.mrf.mxu0
    %v456 = vadd.f32 0.0, %v455
    %v457 = vpop.f32.mrf.mxu0
    %458 = vmatprep.mubr.bf16.mxu0 0
    %459 = vmatmul.mubr.bf16.gmra.mxu0 %v302
    %v460 = vpop.f32.mrf.mxu0
    %v461 = vadd.f32 0.0, %v460
    %v462 = vpop.f32.mrf.mxu0
    %v463 = vpop.f32.mrf.mxu0
    %v464 = vadd.f32 0.0, %v463
    %v465 = vpop.f32.mrf.mxu0
    %466 = vmatprep.mubr.bf16.mxu0 0
    %467 = vmatmul.mubr.bf16.gmra.mxu0 %v303
    %v468 = vpop.f32.mrf.mxu0
    %v469 = vadd.f32 0.0, %v468
    %v470 = vpop.f32.mrf.mxu0
    %v471 = vpop.f32.mrf.mxu0
    %v472 = vadd.f32 0.0, %v471
    %v473 = vpop.f32.mrf.mxu0
    %474 = vmatprep.mubr.bf16.mxu0 0
    %475 = vmatmul.mubr.bf16.gmra.mxu0 %v304
    %v476 = vpop.f32.mrf.mxu0
    %v477 = vadd.f32 0.0, %v476
    %v478 = vpop.f32.mrf.mxu0
    %v479 = vpop.f32.mrf.mxu0
    %v480 = vadd.f32 0.0, %v479
    %v481 = vpop.f32.mrf.mxu0
    %482 = vmatprep.mubr.bf16.mxu0 0
    %483 = vmatmul.mubr.bf16.gmra.mxu0 %v305
    %v484 = vpop.f32.mrf.mxu0
    %v485 = vadd.f32 0.0, %v484
    %v486 = vpop.f32.mrf.mxu0
    %v487 = vpop.f32.mrf.mxu0
    %v488 = vadd.f32 0.0, %v487
    %v489 = vpop.f32.mrf.mxu0
    %490 = vmatprep.mubr.bf16.mxu0 0
    %491 = vmatmul.mubr.bf16.gmra.mxu0 %v306
    %v492 = vpop.f32.mrf.mxu0
    %v493 = vadd.f32 0.0, %v492
    %v494 = vpop.f32.mrf.mxu0
    %v495 = vpop.f32.mrf.mxu0
    %v496 = vadd.f32 0.0, %v495
    %v497 = vpop.f32.mrf.mxu0
    %498 = vmatprep.mubr.bf16.mxu0 0
    %499 = vmatmul.mubr.bf16.gmra.mxu0 %v307
    %v500 = vpop.f32.mrf.mxu0
    %v501 = vadd.f32 0.0, %v500
    %v502 = vpop.f32.mrf.mxu0
    %v503 = vpop.f32.mrf.mxu0
    %v504 = vadd.f32 0.0, %v503
    %v505 = vpop.f32.mrf.mxu0
    %506 = vmatprep.mubr.bf16.mxu0 0
    %507 = vmatmul.mubr.bf16.gmra.mxu0 %v308
    %v508 = vpop.f32.mrf.mxu0
    %v509 = vadd.f32 0.0, %v508
    %v510 = vpop.f32.mrf.mxu0
    %v511 = vpop.f32.mrf.mxu0
    %v512 = vadd.f32 0.0, %v511
    %v513 = vpop.f32.mrf.mxu0
    %514 = vmatprep.mubr.bf16.mxu0 0
    %515 = vmatmul.mubr.bf16.gmra.mxu0 %v309
    %v516 = vpop.f32.mrf.mxu0
    %v517 = vadd.f32 0.0, %v516
    %v518 = vpop.f32.mrf.mxu0
    %v519 = vpop.f32.mrf.mxu0
    %v520 = vadd.f32 0.0, %v519
    %v521 = vpop.f32.mrf.mxu0
    %522 = vmatprep.mubr.bf16.mxu0 0
    %523 = vmatmul.mubr.bf16.gmra.mxu0 %v310
    %v524 = vpop.f32.mrf.mxu0
    %v525 = vadd.f32 0.0, %v524
    %v526 = vpop.f32.mrf.mxu0
    %v527 = vpop.f32.mrf.mxu0
    %v528 = vadd.f32 0.0, %v527
    %v529 = vpop.f32.mrf.mxu0
    %530 = vmatprep.mubr.bf16.mxu0 0
    %531 = vmatmul.mubr.bf16.gmra.mxu0 %v311
    %v532 = vpop.f32.mrf.mxu0
    %v533 = vadd.f32 0.0, %v532
    %v534 = vpop.f32.mrf.mxu0
    %v535 = vpop.f32.mrf.mxu0
    %v536 = vadd.f32 0.0, %v535
    %v537 = vpop.f32.mrf.mxu0
    %538 = vmatprep.mubr.bf16.mxu0 0
    %539 = vmatmul.mubr.bf16.gmra.mxu0 %v312
    %v540 = vpop.f32.mrf.mxu0
    %v541 = vadd.f32 0.0, %v540
    %v542 = vpop.f32.mrf.mxu0
    %v543 = vpop.f32.mrf.mxu0
    %v544 = vadd.f32 0.0, %v543
    %v545 = vpop.f32.mrf.mxu0
    %546 = vmatprep.mubr.bf16.mxu0 0
    %547 = vmatmul.mubr.bf16.gmra.mxu0 %v313
    %v548 = vpop.f32.mrf.mxu0
    %v549 = vadd.f32 0.0, %v548
    %v550 = vpop.f32.mrf.mxu0
    %v551 = vpop.f32.mrf.mxu0
    %v552 = vadd.f32 0.0, %v551
    %v553 = vpop.f32.mrf.mxu0
    %554 = vdwg.mxu0
    %555 = vmatprep.subr.bf16.mxu0 0
    %556 = vmatpush1.bf16.msra.mxu0 %v185
    %557 = vmatprep.subr.bf16.mxu0 0
    %558 = vmatpush1.bf16.msra.mxu0 %v184
    %559 = vmatprep.subr.bf16.mxu0 0
    %560 = vmatpush1.bf16.msra.mxu0 %v183
    %561 = vmatprep.subr.bf16.mxu0 0
    %562 = vmatpush1.bf16.msra.mxu0 %v182
    %563 = vmatprep.subr.bf16.mxu0 0
    %564 = vmatpush1.bf16.msra.mxu0 %v181
    %565 = vmatprep.subr.bf16.mxu0 0
    %566 = vmatpush1.bf16.msra.mxu0 %v180
    %567 = vmatprep.subr.bf16.mxu0 0
    %568 = vmatpush1.bf16.msra.mxu0 %v179
    %569 = vmatprep.subr.bf16.mxu0 0
    %570 = vmatpush1.bf16.msra.mxu0 %v178
    %571 = vmatprep.subr.bf16.mxu0 0
    %572 = vmatpush2.bf16.msra.mxu0 0
    %573 = vmatprep.subr.bf16.mxu0 0
    %574 = vmatpush2.bf16.msra.mxu0 0
    %575 = vmatprep.subr.bf16.mxu0 0
    %576 = vmatpush2.bf16.msra.mxu0 0
    %577 = vmatprep.subr.bf16.mxu0 0
    %578 = vmatpush2.bf16.msra.mxu0 0
    %579 = vmatprep.subr.bf16.mxu0 0
    %580 = vmatpush2.bf16.msra.mxu0 0
    %581 = vmatprep.subr.bf16.mxu0 0
    %582 = vmatpush2.bf16.msra.mxu0 0
    %583 = vmatprep.subr.bf16.mxu0 0
    %584 = vmatpush2.bf16.msra.mxu0 0
    %585 = vmatprep.subr.bf16.mxu0 0
    %586 = vmatpush2.bf16.msra.mxu0 0
    %587 = vmatprep.mubr.bf16.mxu0 0
    %588 = vmatmul.mubr.bf16.gmra.mxu0 %v218
    %v589 = vpop.f32.mrf.mxu0
    %v590 = vadd.f32 %v429, %v589
    %v591 = vpop.f32.mrf.mxu0
    %v592 = vpop.f32.mrf.mxu0
    %v593 = vadd.f32 %v432, %v592
    %v594 = vpop.f32.mrf.mxu0
    %595 = vmatprep.mubr.bf16.mxu0 0
    %596 = vmatmul.mubr.bf16.gmra.mxu0 %v219
    %v597 = vpop.f32.mrf.mxu0
    %v598 = vadd.f32 %v437, %v597
    %v599 = vpop.f32.mrf.mxu0
    %v600 = vpop.f32.mrf.mxu0
    %v601 = vadd.f32 %v440, %v600
    %v602 = vpop.f32.mrf.mxu0
    %603 = vmatprep.mubr.bf16.mxu0 0
    %604 = vmatmul.mubr.bf16.gmra.mxu0 %v220
    %v605 = vpop.f32.mrf.mxu0
    %v606 = vadd.f32 %v445, %v605
    %v607 = vpop.f32.mrf.mxu0
    %v608 = vpop.f32.mrf.mxu0
    %v609 = vadd.f32 %v448, %v608
    %v610 = vpop.f32.mrf.mxu0
    %611 = vmatprep.mubr.bf16.mxu0 0
    %612 = vmatmul.mubr.bf16.gmra.mxu0 %v221
    %v613 = vpop.f32.mrf.mxu0
    %v614 = vadd.f32 %v453, %v613
    %v615 = vpop.f32.mrf.mxu0
    %v616 = vpop.f32.mrf.mxu0
    %v617 = vadd.f32 %v456, %v616
    %v618 = vpop.f32.mrf.mxu0
    %619 = vmatprep.mubr.bf16.mxu0 0
    %620 = vmatmul.mubr.bf16.gmra.mxu0 %v222
    %v621 = vpop.f32.mrf.mxu0
    %v622 = vadd.f32 %v461, %v621
    %v623 = vpop.f32.mrf.mxu0
    %v624 = vpop.f32.mrf.mxu0
    %v625 = vadd.f32 %v464, %v624
    %v626 = vpop.f32.mrf.mxu0
    %627 = vmatprep.mubr.bf16.mxu0 0
    %628 = vmatmul.mubr.bf16.gmra.mxu0 %v223
    %v629 = vpop.f32.mrf.mxu0
    %v630 = vadd.f32 %v469, %v629
    %v631 = vpop.f32.mrf.mxu0
    %v632 = vpop.f32.mrf.mxu0
    %v633 = vadd.f32 %v472, %v632
    %v634 = vpop.f32.mrf.mxu0
    %635 = vmatprep.mubr.bf16.mxu0 0
    %636 = vmatmul.mubr.bf16.gmra.mxu0 %v224
    %v637 = vpop.f32.mrf.mxu0
    %v638 = vadd.f32 %v477, %v637
    %v639 = vpop.f32.mrf.mxu0
    %v640 = vpop.f32.mrf.mxu0
    %v641 = vadd.f32 %v480, %v640
    %v642 = vpop.f32.mrf.mxu0
    %643 = vmatprep.mubr.bf16.mxu0 0
    %644 = vmatmul.mubr.bf16.gmra.mxu0 %v225
    %v645 = vpop.f32.mrf.mxu0
    %v646 = vadd.f32 %v485, %v645
    %v647 = vpop.f32.mrf.mxu0
    %v648 = vpop.f32.mrf.mxu0
    %v649 = vadd.f32 %v488, %v648
    %v650 = vpop.f32.mrf.mxu0
    %651 = vmatprep.mubr.bf16.mxu0 0
    %652 = vmatmul.mubr.bf16.gmra.mxu0 %v226
    %v653 = vpop.f32.mrf.mxu0
    %v654 = vadd.f32 %v493, %v653
    %v655 = vpop.f32.mrf.mxu0
    %v656 = vpop.f32.mrf.mxu0
    %v657 = vadd.f32 %v496, %v656
    %v658 = vpop.f32.mrf.mxu0
    %659 = vmatprep.mubr.bf16.mxu0 0
    %660 = vmatmul.mubr.bf16.gmra.mxu0 %v227
    %v661 = vpop.f32.mrf.mxu0
    %v662 = vadd.f32 %v501, %v661
    %v663 = vpop.f32.mrf.mxu0
    %v664 = vpop.f32.mrf.mxu0
    %v665 = vadd.f32 %v504, %v664
    %v666 = vpop.f32.mrf.mxu0
    %667 = vmatprep.mubr.bf16.mxu0 0
    %668 = vmatmul.mubr.bf16.gmra.mxu0 %v228
    %v669 = vpop.f32.mrf.mxu0
    %v670 = vadd.f32 %v509, %v669
    %v671 = vpop.f32.mrf.mxu0
    %v672 = vpop.f32.mrf.mxu0
    %v673 = vadd.f32 %v512, %v672
    %v674 = vpop.f32.mrf.mxu0
    %675 = vmatprep.mubr.bf16.mxu0 0
    %676 = vmatmul.mubr.bf16.gmra.mxu0 %v229
    %v677 = vpop.f32.mrf.mxu0
    %v678 = vadd.f32 %v517, %v677
    %v679 = vpop.f32.mrf.mxu0
    %v680 = vpop.f32.mrf.mxu0
    %v681 = vadd.f32 %v520, %v680
    %v682 = vpop.f32.mrf.mxu0
    %683 = vmatprep.mubr.bf16.mxu0 0
    %684 = vmatmul.mubr.bf16.gmra.mxu0 %v230
    %v685 = vpop.f32.mrf.mxu0
    %v686 = vadd.f32 %v525, %v685
    %v687 = vpop.f32.mrf.mxu0
    %v688 = vpop.f32.mrf.mxu0
    %v689 = vadd.f32 %v528, %v688
    %v690 = vpop.f32.mrf.mxu0
    %691 = vmatprep.mubr.bf16.mxu0 0
    %692 = vmatmul.mubr.bf16.gmra.mxu0 %v231
    %v693 = vpop.f32.mrf.mxu0
    %v694 = vadd.f32 %v533, %v693
    %v695 = vpop.f32.mrf.mxu0
    %v696 = vpop.f32.mrf.mxu0
    %v697 = vadd.f32 %v536, %v696
    %v698 = vpop.f32.mrf.mxu0
    %699 = vmatprep.mubr.bf16.mxu0 0
    %700 = vmatmul.mubr.bf16.gmra.mxu0 %v232
    %v701 = vpop.f32.mrf.mxu0
    %v702 = vadd.f32 %v541, %v701
    %v703 = vpop.f32.mrf.mxu0
    %v704 = vpop.f32.mrf.mxu0
    %v705 = vadd.f32 %v544, %v704
    %v706 = vpop.f32.mrf.mxu0
    %707 = vmatprep.mubr.bf16.mxu0 0
    %708 = vmatmul.mubr.bf16.gmra.mxu0 %v233
    %v709 = vpop.f32.mrf.mxu0
    %v710 = vadd.f32 %v549, %v709
    %v711 = vpop.f32.mrf.mxu0
    %v712 = vpop.f32.mrf.mxu0
    %v713 = vadd.f32 %v552, %v712
    %v714 = vpop.f32.mrf.mxu0
    %715 = vdwg.mxu0
    %716 = vmatprep.subr.bf16.mxu0 0
    %717 = vmatpush1.bf16.msra.mxu0 %v185
    %718 = vmatprep.subr.bf16.mxu0 0
    %719 = vmatpush1.bf16.msra.mxu0 %v184
    %720 = vmatprep.subr.bf16.mxu0 0
    %721 = vmatpush1.bf16.msra.mxu0 %v183
    %722 = vmatprep.subr.bf16.mxu0 0
    %723 = vmatpush1.bf16.msra.mxu0 %v182
    %724 = vmatprep.subr.bf16.mxu0 0
    %725 = vmatpush1.bf16.msra.mxu0 %v181
    %726 = vmatprep.subr.bf16.mxu0 0
    %727 = vmatpush1.bf16.msra.mxu0 %v180
    %728 = vmatprep.subr.bf16.mxu0 0
    %729 = vmatpush1.bf16.msra.mxu0 %v179
    %730 = vmatprep.subr.bf16.mxu0 0
    %731 = vmatpush1.bf16.msra.mxu0 %v178
    %732 = vmatprep.subr.bf16.mxu0 0
    %733 = vmatpush2.bf16.msra.mxu0 0
    %734 = vmatprep.subr.bf16.mxu0 0
    %735 = vmatpush2.bf16.msra.mxu0 0
    %736 = vmatprep.subr.bf16.mxu0 0
    %737 = vmatpush2.bf16.msra.mxu0 0
    %738 = vmatprep.subr.bf16.mxu0 0
    %739 = vmatpush2.bf16.msra.mxu0 0
    %740 = vmatprep.subr.bf16.mxu0 0
    %741 = vmatpush2.bf16.msra.mxu0 0
    %742 = vmatprep.subr.bf16.mxu0 0
    %743 = vmatpush2.bf16.msra.mxu0 0
    %744 = vmatprep.subr.bf16.mxu0 0
    %745 = vmatpush2.bf16.msra.mxu0 0
    %746 = vmatprep.subr.bf16.mxu0 0
    %747 = vmatpush2.bf16.msra.mxu0 0
    %748 = vmatprep.mubr.bf16.mxu0 0
    %749 = vmatmul.mubr.bf16.gmra.mxu0 %v378
    %v750 = vpop.f32.mrf.mxu0
    %v751 = vadd.f32 0.0, %v750
    %v752 = vpop.f32.mrf.mxu0
    %v753 = vpop.f32.mrf.mxu0
    %v754 = vadd.f32 0.0, %v753
    %v755 = vpop.f32.mrf.mxu0
    %756 = vmatprep.mubr.bf16.mxu0 0
    %757 = vmatmul.mubr.bf16.gmra.mxu0 %v379
    %v758 = vpop.f32.mrf.mxu0
    %v759 = vadd.f32 0.0, %v758
    %v760 = vpop.f32.mrf.mxu0
    %v761 = vpop.f32.mrf.mxu0
    %v762 = vadd.f32 0.0, %v761
    %v763 = vpop.f32.mrf.mxu0
    %764 = vmatprep.mubr.bf16.mxu0 0
    %765 = vmatmul.mubr.bf16.gmra.mxu0 %v380
    %v766 = vpop.f32.mrf.mxu0
    %v767 = vadd.f32 0.0, %v766
    %v768 = vpop.f32.mrf.mxu0
    %v769 = vpop.f32.mrf.mxu0
    %v770 = vadd.f32 0.0, %v769
    %v771 = vpop.f32.mrf.mxu0
    %772 = vmatprep.mubr.bf16.mxu0 0
    %773 = vmatmul.mubr.bf16.gmra.mxu0 %v381
    %v774 = vpop.f32.mrf.mxu0
    %v775 = vadd.f32 0.0, %v774
    %v776 = vpop.f32.mrf.mxu0
    %v777 = vpop.f32.mrf.mxu0
    %v778 = vadd.f32 0.0, %v777
    %v779 = vpop.f32.mrf.mxu0
    %780 = vmatprep.mubr.bf16.mxu0 0
    %781 = vmatmul.mubr.bf16.gmra.mxu0 %v382
    %v782 = vpop.f32.mrf.mxu0
    %v783 = vadd.f32 0.0, %v782
    %v784 = vpop.f32.mrf.mxu0
    %v785 = vpop.f32.mrf.mxu0
    %v786 = vadd.f32 0.0, %v785
    %v787 = vpop.f32.mrf.mxu0
    %788 = vmatprep.mubr.bf16.mxu0 0
    %789 = vmatmul.mubr.bf16.gmra.mxu0 %v383
    %v790 = vpop.f32.mrf.mxu0
    %v791 = vadd.f32 0.0, %v790
    %v792 = vpop.f32.mrf.mxu0
    %v793 = vpop.f32.mrf.mxu0
    %v794 = vadd.f32 0.0, %v793
    %v795 = vpop.f32.mrf.mxu0
    %796 = vmatprep.mubr.bf16.mxu0 0
    %797 = vmatmul.mubr.bf16.gmra.mxu0 %v384
    %v798 = vpop.f32.mrf.mxu0
    %v799 = vadd.f32 0.0, %v798
    %v800 = vpop.f32.mrf.mxu0
    %v801 = vpop.f32.mrf.mxu0
    %v802 = vadd.f32 0.0, %v801
    %v803 = vpop.f32.mrf.mxu0
    %804 = vmatprep.mubr.bf16.mxu0 0
    %805 = vmatmul.mubr.bf16.gmra.mxu0 %v385
    %v806 = vpop.f32.mrf.mxu0
    %v807 = vadd.f32 0.0, %v806
    %v808 = vpop.f32.mrf.mxu0
    %v809 = vpop.f32.mrf.mxu0
    %v810 = vadd.f32 0.0, %v809
    %v811 = vpop.f32.mrf.mxu0
    %812 = vmatprep.mubr.bf16.mxu0 0
    %813 = vmatmul.mubr.bf16.gmra.mxu0 %v386
    %v814 = vpop.f32.mrf.mxu0
    %v815 = vadd.f32 0.0, %v814
    %v816 = vpop.f32.mrf.mxu0
    %v817 = vpop.f32.mrf.mxu0
    %v818 = vadd.f32 0.0, %v817
    %v819 = vpop.f32.mrf.mxu0
    %820 = vmatprep.mubr.bf16.mxu0 0
    %821 = vmatmul.mubr.bf16.gmra.mxu0 %v387
    %v822 = vpop.f32.mrf.mxu0
    %v823 = vadd.f32 0.0, %v822
    %v824 = vpop.f32.mrf.mxu0
    %v825 = vpop.f32.mrf.mxu0
    %v826 = vadd.f32 0.0, %v825
    %v827 = vpop.f32.mrf.mxu0
    %828 = vmatprep.mubr.bf16.mxu0 0
    %829 = vmatmul.mubr.bf16.gmra.mxu0 %v388
    %v830 = vpop.f32.mrf.mxu0
    %v831 = vadd.f32 0.0, %v830
    %v832 = vpop.f32.mrf.mxu0
    %v833 = vpop.f32.mrf.mxu0
    %v834 = vadd.f32 0.0, %v833
    %v835 = vpop.f32.mrf.mxu0
    %836 = vmatprep.mubr.bf16.mxu0 0
    %837 = vmatmul.mubr.bf16.gmra.mxu0 %v389
    %v838 = vpop.f32.mrf.mxu0
    %v839 = vadd.f32 0.0, %v838
    %v840 = vpop.f32.mrf.mxu0
    %v841 = vpop.f32.mrf.mxu0
    %v842 = vadd.f32 0.0, %v841
    %v843 = vpop.f32.mrf.mxu0
    %844 = vmatprep.mubr.bf16.mxu0 0
    %845 = vmatmul.mubr.bf16.gmra.mxu0 %v390
    %v846 = vpop.f32.mrf.mxu0
    %v847 = vadd.f32 0.0, %v846
    %v848 = vpop.f32.mrf.mxu0
    %v849 = vpop.f32.mrf.mxu0
    %v850 = vadd.f32 0.0, %v849
    %v851 = vpop.f32.mrf.mxu0
    %852 = vmatprep.mubr.bf16.mxu0 0
    %853 = vmatmul.mubr.bf16.gmra.mxu0 %v391
    %v854 = vpop.f32.mrf.mxu0
    %v855 = vadd.f32 0.0, %v854
    %v856 = vpop.f32.mrf.mxu0
    %v857 = vpop.f32.mrf.mxu0
    %v858 = vadd.f32 0.0, %v857
    %v859 = vpop.f32.mrf.mxu0
    %860 = vmatprep.mubr.bf16.mxu0 0
    %861 = vmatmul.mubr.bf16.gmra.mxu0 %v392
    %v862 = vpop.f32.mrf.mxu0
    %v863 = vadd.f32 0.0, %v862
    %v864 = vpop.f32.mrf.mxu0
    %v865 = vpop.f32.mrf.mxu0
    %v866 = vadd.f32 0.0, %v865
    %v867 = vpop.f32.mrf.mxu0
    %868 = vmatprep.mubr.bf16.mxu0 0
    %869 = vmatmul.mubr.bf16.gmra.mxu0 %v393
    %v870 = vpop.f32.mrf.mxu0
    %v871 = vadd.f32 0.0, %v870
    %v872 = vpop.f32.mrf.mxu0
    %v873 = vpop.f32.mrf.mxu0
    %v874 = vadd.f32 0.0, %v873
    %v875 = vpop.f32.mrf.mxu0
    %876 = vdwg.mxu0
    %v877 = vadd.f32 %v590, %v751
    %v878 = vadd.f32 %v593, %v754
    %v879 = vadd.f32 %v598, %v759
    %v880 = vadd.f32 %v601, %v762
    %v881 = vadd.f32 %v606, %v767
    %v882 = vadd.f32 %v609, %v770
    %v883 = vadd.f32 %v614, %v775
    %v884 = vadd.f32 %v617, %v778
    %v885 = vadd.f32 %v622, %v783
    %v886 = vadd.f32 %v625, %v786
    %v887 = vadd.f32 %v630, %v791
    %v888 = vadd.f32 %v633, %v794
    %v889 = vadd.f32 %v638, %v799
    %v890 = vadd.f32 %v641, %v802
    %v891 = vadd.f32 %v646, %v807
    %v892 = vadd.f32 %v649, %v810
    %v893 = vadd.f32 %v654, %v815
    %v894 = vadd.f32 %v657, %v818
    %v895 = vadd.f32 %v662, %v823
    %v896 = vadd.f32 %v665, %v826
    %v897 = vadd.f32 %v670, %v831
    %v898 = vadd.f32 %v673, %v834
    %v899 = vadd.f32 %v678, %v839
    %v900 = vadd.f32 %v681, %v842
    %v901 = vadd.f32 %v686, %v847
    %v902 = vadd.f32 %v689, %v850
    %v903 = vadd.f32 %v694, %v855
    %v904 = vadd.f32 %v697, %v858
    %v905 = vadd.f32 %v702, %v863
    %v906 = vadd.f32 %v705, %v866
    %v907 = vadd.f32 %v710, %v871
    %v908 = vadd.f32 %v713, %v874
    %v909 = vmul.f32 %v77, %v77
    %v910 = vmul.f32 %v78, %v78
    %v911 = vmul.f32 %v79, %v79
    %v912 = vmul.f32 %v80, %v80
    %v913 = vmul.f32 %v81, %v81
    %v914 = vmul.f32 %v82, %v82
    %v915 = vmul.f32 %v83, %v83
    %v916 = vmul.f32 %v84, %v84
    %v917 = vmul.f32 %v85, %v85
    %v918 = vmul.f32 %v86, %v86
    %v919 = vmul.f32 %v87, %v87
    %v920 = vmul.f32 %v88, %v88
    %v921 = vmul.f32 %v89, %v89
    %v922 = vmul.f32 %v90, %v90
    %v923 = vmul.f32 %v91, %v91
    %v924 = vmul.f32 %v92, %v92
    %v925 = vmul.f32 %v93, %v93
    %v926 = vmul.f32 %v94, %v94
    %v927 = vmul.f32 %v95, %v95
    %v928 = vmul.f32 %v96, %v96
    %v929 = vmul.f32 %v97, %v97
    %v930 = vmul.f32 %v98, %v98
    %v931 = vmul.f32 %v99, %v99
    %v932 = vmul.f32 %v100, %v100
    %v933 = vmul.f32 %v101, %v101
    %v934 = vmul.f32 %v102, %v102
    %v935 = vmul.f32 %v103, %v103
    %v936 = vmul.f32 %v104, %v104
    %v937 = vmul.f32 %v105, %v105
    %v938 = vmul.f32 %v106, %v106
    %v939 = vmul.f32 %v107, %v107
    %v940 = vmul.f32 %v108, %v108
    %v941 = vpack.c.bf16 %v910, %v909
    %v942 = vpack.c.bf16 %v912, %v911
    %v943 = vpack.c.bf16 %v914, %v913
    %v944 = vpack.c.bf16 %v916, %v915
    %v945 = vpack.c.bf16 %v918, %v917
    %v946 = vpack.c.bf16 %v920, %v919
    %v947 = vpack.c.bf16 %v922, %v921
    %v948 = vpack.c.bf16 %v924, %v923
    %v949 = vpack.c.bf16 %v926, %v925
    %v950 = vpack.c.bf16 %v928, %v927
    %v951 = vpack.c.bf16 %v930, %v929
    %v952 = vpack.c.bf16 %v932, %v931
    %v953 = vpack.c.bf16 %v934, %v933
    %v954 = vpack.c.bf16 %v936, %v935
    %v955 = vpack.c.bf16 %v938, %v937
    %v956 = vpack.c.bf16 %v940, %v939
    %v957 = vunpack.c.l.bf16 %v941
    %v958 = vunpack.c.h.bf16 %v941
    %v959 = vunpack.c.l.bf16 %v942
    %v960 = vunpack.c.h.bf16 %v942
    %v961 = vunpack.c.l.bf16 %v943
    %v962 = vunpack.c.h.bf16 %v943
    %v963 = vunpack.c.l.bf16 %v944
    %v964 = vunpack.c.h.bf16 %v944
    %v965 = vunpack.c.l.bf16 %v945
    %v966 = vunpack.c.h.bf16 %v945
    %v967 = vunpack.c.l.bf16 %v946
    %v968 = vunpack.c.h.bf16 %v946
    %v969 = vunpack.c.l.bf16 %v947
    %v970 = vunpack.c.h.bf16 %v947
    %v971 = vunpack.c.l.bf16 %v948
    %v972 = vunpack.c.h.bf16 %v948
    %v973 = vunpack.c.l.bf16 %v949
    %v974 = vunpack.c.h.bf16 %v949
    %v975 = vunpack.c.l.bf16 %v950
    %v976 = vunpack.c.h.bf16 %v950
    %v977 = vunpack.c.l.bf16 %v951
    %v978 = vunpack.c.h.bf16 %v951
    %v979 = vunpack.c.l.bf16 %v952
    %v980 = vunpack.c.h.bf16 %v952
    %v981 = vunpack.c.l.bf16 %v953
    %v982 = vunpack.c.h.bf16 %v953
    %v983 = vunpack.c.l.bf16 %v954
    %v984 = vunpack.c.h.bf16 %v954
    %v985 = vunpack.c.l.bf16 %v955
    %v986 = vunpack.c.h.bf16 %v955
    %v987 = vunpack.c.l.bf16 %v956
    %v988 = vunpack.c.h.bf16 %v956
    %v989 = vsub.f32 %v909, %v957
    %v990 = vsub.f32 %v910, %v958
    %v991 = vsub.f32 %v911, %v959
    %v992 = vsub.f32 %v912, %v960
    %v993 = vsub.f32 %v913, %v961
    %v994 = vsub.f32 %v914, %v962
    %v995 = vsub.f32 %v915, %v963
    %v996 = vsub.f32 %v916, %v964
    %v997 = vsub.f32 %v917, %v965
    %v998 = vsub.f32 %v918, %v966
    %v999 = vsub.f32 %v919, %v967
    %v1000 = vsub.f32 %v920, %v968
    %v1001 = vsub.f32 %v921, %v969
    %v1002 = vsub.f32 %v922, %v970
    %v1003 = vsub.f32 %v923, %v971
    %v1004 = vsub.f32 %v924, %v972
    %v1005 = vsub.f32 %v925, %v973
    %v1006 = vsub.f32 %v926, %v974
    %v1007 = vsub.f32 %v927, %v975
    %v1008 = vsub.f32 %v928, %v976
    %v1009 = vsub.f32 %v929, %v977
    %v1010 = vsub.f32 %v930, %v978
    %v1011 = vsub.f32 %v931, %v979
    %v1012 = vsub.f32 %v932, %v980
    %v1013 = vsub.f32 %v933, %v981
    %v1014 = vsub.f32 %v934, %v982
    %v1015 = vsub.f32 %v935, %v983
    %v1016 = vsub.f32 %v936, %v984
    %v1017 = vsub.f32 %v937, %v985
    %v1018 = vsub.f32 %v938, %v986
    %v1019 = vsub.f32 %v939, %v987
    %v1020 = vsub.f32 %v940, %v988
    %v1021 = vpack.c.bf16 %v990, %v989
    %v1022 = vpack.c.bf16 %v992, %v991
    %v1023 = vpack.c.bf16 %v994, %v993
    %v1024 = vpack.c.bf16 %v996, %v995
    %v1025 = vpack.c.bf16 %v998, %v997
    %v1026 = vpack.c.bf16 %v1000, %v999
    %v1027 = vpack.c.bf16 %v1002, %v1001
    %v1028 = vpack.c.bf16 %v1004, %v1003
    %v1029 = vpack.c.bf16 %v1006, %v1005
    %v1030 = vpack.c.bf16 %v1008, %v1007
    %v1031 = vpack.c.bf16 %v1010, %v1009
    %v1032 = vpack.c.bf16 %v1012, %v1011
    %v1033 = vpack.c.bf16 %v1014, %v1013
    %v1034 = vpack.c.bf16 %v1016, %v1015
    %v1035 = vpack.c.bf16 %v1018, %v1017
    %v1036 = vpack.c.bf16 %v1020, %v1019
    %v1037 = vunpack.c.l.bf16 %v1021
    %v1038 = vunpack.c.h.bf16 %v1021
    %v1039 = vunpack.c.l.bf16 %v1022
    %v1040 = vunpack.c.h.bf16 %v1022
    %v1041 = vunpack.c.l.bf16 %v1023
    %v1042 = vunpack.c.h.bf16 %v1023
    %v1043 = vunpack.c.l.bf16 %v1024
    %v1044 = vunpack.c.h.bf16 %v1024
    %v1045 = vunpack.c.l.bf16 %v1025
    %v1046 = vunpack.c.h.bf16 %v1025
    %v1047 = vunpack.c.l.bf16 %v1026
    %v1048 = vunpack.c.h.bf16 %v1026
    %v1049 = vunpack.c.l.bf16 %v1027
    %v1050 = vunpack.c.h.bf16 %v1027
    %v1051 = vunpack.c.l.bf16 %v1028
    %v1052 = vunpack.c.h.bf16 %v1028
    %v1053 = vunpack.c.l.bf16 %v1029
    %v1054 = vunpack.c.h.bf16 %v1029
    %v1055 = vunpack.c.l.bf16 %v1030
    %v1056 = vunpack.c.h.bf16 %v1030
    %v1057 = vunpack.c.l.bf16 %v1031
    %v1058 = vunpack.c.h.bf16 %v1031
    %v1059 = vunpack.c.l.bf16 %v1032
    %v1060 = vunpack.c.h.bf16 %v1032
    %v1061 = vunpack.c.l.bf16 %v1033
    %v1062 = vunpack.c.h.bf16 %v1033
    %v1063 = vunpack.c.l.bf16 %v1034
    %v1064 = vunpack.c.h.bf16 %v1034
    %v1065 = vunpack.c.l.bf16 %v1035
    %v1066 = vunpack.c.h.bf16 %v1035
    %v1067 = vunpack.c.l.bf16 %v1036
    %v1068 = vunpack.c.h.bf16 %v1036
    %v1069 = vsub.f32 %v989, %v1037
    %v1070 = vsub.f32 %v990, %v1038
    %v1071 = vsub.f32 %v991, %v1039
    %v1072 = vsub.f32 %v992, %v1040
    %v1073 = vsub.f32 %v993, %v1041
    %v1074 = vsub.f32 %v994, %v1042
    %v1075 = vsub.f32 %v995, %v1043
    %v1076 = vsub.f32 %v996, %v1044
    %v1077 = vsub.f32 %v997, %v1045
    %v1078 = vsub.f32 %v998, %v1046
    %v1079 = vsub.f32 %v999, %v1047
    %v1080 = vsub.f32 %v1000, %v1048
    %v1081 = vsub.f32 %v1001, %v1049
    %v1082 = vsub.f32 %v1002, %v1050
    %v1083 = vsub.f32 %v1003, %v1051
    %v1084 = vsub.f32 %v1004, %v1052
    %v1085 = vsub.f32 %v1005, %v1053
    %v1086 = vsub.f32 %v1006, %v1054
    %v1087 = vsub.f32 %v1007, %v1055
    %v1088 = vsub.f32 %v1008, %v1056
    %v1089 = vsub.f32 %v1009, %v1057
    %v1090 = vsub.f32 %v1010, %v1058
    %v1091 = vsub.f32 %v1011, %v1059
    %v1092 = vsub.f32 %v1012, %v1060
    %v1093 = vsub.f32 %v1013, %v1061
    %v1094 = vsub.f32 %v1014, %v1062
    %v1095 = vsub.f32 %v1015, %v1063
    %v1096 = vsub.f32 %v1016, %v1064
    %v1097 = vsub.f32 %v1017, %v1065
    %v1098 = vsub.f32 %v1018, %v1066
    %v1099 = vsub.f32 %v1019, %v1067
    %v1100 = vsub.f32 %v1020, %v1068
    %v1101 = vpack.c.bf16 %v1070, %v1069
    %v1102 = vpack.c.bf16 %v1072, %v1071
    %v1103 = vpack.c.bf16 %v1074, %v1073
    %v1104 = vpack.c.bf16 %v1076, %v1075
    %v1105 = vpack.c.bf16 %v1078, %v1077
    %v1106 = vpack.c.bf16 %v1080, %v1079
    %v1107 = vpack.c.bf16 %v1082, %v1081
    %v1108 = vpack.c.bf16 %v1084, %v1083
    %v1109 = vpack.c.bf16 %v1086, %v1085
    %v1110 = vpack.c.bf16 %v1088, %v1087
    %v1111 = vpack.c.bf16 %v1090, %v1089
    %v1112 = vpack.c.bf16 %v1092, %v1091
    %v1113 = vpack.c.bf16 %v1094, %v1093
    %v1114 = vpack.c.bf16 %v1096, %v1095
    %v1115 = vpack.c.bf16 %v1098, %v1097
    %v1116 = vpack.c.bf16 %v1100, %v1099
    %1117 = vmatprep.subr.bf16.mxu0 0
    %1118 = vmatpush1.bf16.msra.mxu0 %v185
    %1119 = vmatprep.subr.bf16.mxu0 0
    %1120 = vmatpush1.bf16.msra.mxu0 %v184
    %1121 = vmatprep.subr.bf16.mxu0 0
    %1122 = vmatpush1.bf16.msra.mxu0 %v183
    %1123 = vmatprep.subr.bf16.mxu0 0
    %1124 = vmatpush1.bf16.msra.mxu0 %v182
    %1125 = vmatprep.subr.bf16.mxu0 0
    %1126 = vmatpush1.bf16.msra.mxu0 %v181
    %1127 = vmatprep.subr.bf16.mxu0 0
    %1128 = vmatpush1.bf16.msra.mxu0 %v180
    %1129 = vmatprep.subr.bf16.mxu0 0
    %1130 = vmatpush1.bf16.msra.mxu0 %v179
    %1131 = vmatprep.subr.bf16.mxu0 0
    %1132 = vmatpush1.bf16.msra.mxu0 %v178
    %1133 = vmatprep.subr.bf16.mxu0 0
    %1134 = vmatpush2.bf16.msra.mxu0 0
    %1135 = vmatprep.subr.bf16.mxu0 0
    %1136 = vmatpush2.bf16.msra.mxu0 0
    %1137 = vmatprep.subr.bf16.mxu0 0
    %1138 = vmatpush2.bf16.msra.mxu0 0
    %1139 = vmatprep.subr.bf16.mxu0 0
    %1140 = vmatpush2.bf16.msra.mxu0 0
    %1141 = vmatprep.subr.bf16.mxu0 0
    %1142 = vmatpush2.bf16.msra.mxu0 0
    %1143 = vmatprep.subr.bf16.mxu0 0
    %1144 = vmatpush2.bf16.msra.mxu0 0
    %1145 = vmatprep.subr.bf16.mxu0 0
    %1146 = vmatpush2.bf16.msra.mxu0 0
    %1147 = vmatprep.subr.bf16.mxu0 0
    %1148 = vmatpush2.bf16.msra.mxu0 0
    %1149 = vmatprep.mubr.bf16.mxu0 0
    %1150 = vmatmul.mubr.bf16.gmra.mxu0 %v1021
    %v1151 = vpop.f32.mrf.mxu0
    %v1152 = vadd.f32 0.0, %v1151
    %v1153 = vpop.f32.mrf.mxu0
    %v1154 = vpop.f32.mrf.mxu0
    %v1155 = vadd.f32 0.0, %v1154
    %v1156 = vpop.f32.mrf.mxu0
    %1157 = vmatprep.mubr.bf16.mxu0 0
    %1158 = vmatmul.mubr.bf16.gmra.mxu0 %v1022
    %v1159 = vpop.f32.mrf.mxu0
    %v1160 = vadd.f32 0.0, %v1159
    %v1161 = vpop.f32.mrf.mxu0
    %v1162 = vpop.f32.mrf.mxu0
    %v1163 = vadd.f32 0.0, %v1162
    %v1164 = vpop.f32.mrf.mxu0
    %1165 = vmatprep.mubr.bf16.mxu0 0
    %1166 = vmatmul.mubr.bf16.gmra.mxu0 %v1023
    %v1167 = vpop.f32.mrf.mxu0
    %v1168 = vadd.f32 0.0, %v1167
    %v1169 = vpop.f32.mrf.mxu0
    %v1170 = vpop.f32.mrf.mxu0
    %v1171 = vadd.f32 0.0, %v1170
    %v1172 = vpop.f32.mrf.mxu0
    %1173 = vmatprep.mubr.bf16.mxu0 0
    %1174 = vmatmul.mubr.bf16.gmra.mxu0 %v1024
    %v1175 = vpop.f32.mrf.mxu0
    %v1176 = vadd.f32 0.0, %v1175
    %v1177 = vpop.f32.mrf.mxu0
    %v1178 = vpop.f32.mrf.mxu0
    %v1179 = vadd.f32 0.0, %v1178
    %v1180 = vpop.f32.mrf.mxu0
    %1181 = vmatprep.mubr.bf16.mxu0 0
    %1182 = vmatmul.mubr.bf16.gmra.mxu0 %v1025
    %v1183 = vpop.f32.mrf.mxu0
    %v1184 = vadd.f32 0.0, %v1183
    %v1185 = vpop.f32.mrf.mxu0
    %v1186 = vpop.f32.mrf.mxu0
    %v1187 = vadd.f32 0.0, %v1186
    %v1188 = vpop.f32.mrf.mxu0
    %1189 = vmatprep.mubr.bf16.mxu0 0
    %1190 = vmatmul.mubr.bf16.gmra.mxu0 %v1026
    %v1191 = vpop.f32.mrf.mxu0
    %v1192 = vadd.f32 0.0, %v1191
    %v1193 = vpop.f32.mrf.mxu0
    %v1194 = vpop.f32.mrf.mxu0
    %v1195 = vadd.f32 0.0, %v1194
    %v1196 = vpop.f32.mrf.mxu0
    %1197 = vmatprep.mubr.bf16.mxu0 0
    %1198 = vmatmul.mubr.bf16.gmra.mxu0 %v1027
    %v1199 = vpop.f32.mrf.mxu0
    %v1200 = vadd.f32 0.0, %v1199
    %v1201 = vpop.f32.mrf.mxu0
    %v1202 = vpop.f32.mrf.mxu0
    %v1203 = vadd.f32 0.0, %v1202
    %v1204 = vpop.f32.mrf.mxu0
    %1205 = vmatprep.mubr.bf16.mxu0 0
    %1206 = vmatmul.mubr.bf16.gmra.mxu0 %v1028
    %v1207 = vpop.f32.mrf.mxu0
    %v1208 = vadd.f32 0.0, %v1207
    %v1209 = vpop.f32.mrf.mxu0
    %v1210 = vpop.f32.mrf.mxu0
    %v1211 = vadd.f32 0.0, %v1210
    %v1212 = vpop.f32.mrf.mxu0
    %1213 = vmatprep.mubr.bf16.mxu0 0
    %1214 = vmatmul.mubr.bf16.gmra.mxu0 %v1029
    %v1215 = vpop.f32.mrf.mxu0
    %v1216 = vadd.f32 0.0, %v1215
    %v1217 = vpop.f32.mrf.mxu0
    %v1218 = vpop.f32.mrf.mxu0
    %v1219 = vadd.f32 0.0, %v1218
    %v1220 = vpop.f32.mrf.mxu0
    %1221 = vmatprep.mubr.bf16.mxu0 0
    %1222 = vmatmul.mubr.bf16.gmra.mxu0 %v1030
    %v1223 = vpop.f32.mrf.mxu0
    %v1224 = vadd.f32 0.0, %v1223
    %v1225 = vpop.f32.mrf.mxu0
    %v1226 = vpop.f32.mrf.mxu0
    %v1227 = vadd.f32 0.0, %v1226
    %v1228 = vpop.f32.mrf.mxu0
    %1229 = vmatprep.mubr.bf16.mxu0 0
    %1230 = vmatmul.mubr.bf16.gmra.mxu0 %v1031
    %v1231 = vpop.f32.mrf.mxu0
    %v1232 = vadd.f32 0.0, %v1231
    %v1233 = vpop.f32.mrf.mxu0
    %v1234 = vpop.f32.mrf.mxu0
    %v1235 = vadd.f32 0.0, %v1234
    %v1236 = vpop.f32.mrf.mxu0
    %1237 = vmatprep.mubr.bf16.mxu0 0
    %1238 = vmatmul.mubr.bf16.gmra.mxu0 %v1032
    %v1239 = vpop.f32.mrf.mxu0
    %v1240 = vadd.f32 0.0, %v1239
    %v1241 = vpop.f32.mrf.mxu0
    %v1242 = vpop.f32.mrf.mxu0
    %v1243 = vadd.f32 0.0, %v1242
    %v1244 = vpop.f32.mrf.mxu0
    %1245 = vmatprep.mubr.bf16.mxu0 0
    %1246 = vmatmul.mubr.bf16.gmra.mxu0 %v1033
    %v1247 = vpop.f32.mrf.mxu0
    %v1248 = vadd.f32 0.0, %v1247
    %v1249 = vpop.f32.mrf.mxu0
    %v1250 = vpop.f32.mrf.mxu0
    %v1251 = vadd.f32 0.0, %v1250
    %v1252 = vpop.f32.mrf.mxu0
    %1253 = vmatprep.mubr.bf16.mxu0 0
    %1254 = vmatmul.mubr.bf16.gmra.mxu0 %v1034
    %v1255 = vpop.f32.mrf.mxu0
    %v1256 = vadd.f32 0.0, %v1255
    %v1257 = vpop.f32.mrf.mxu0
    %v1258 = vpop.f32.mrf.mxu0
    %v1259 = vadd.f32 0.0, %v1258
    %v1260 = vpop.f32.mrf.mxu0
    %1261 = vmatprep.mubr.bf16.mxu0 0
    %1262 = vmatmul.mubr.bf16.gmra.mxu0 %v1035
    %v1263 = vpop.f32.mrf.mxu0
    %v1264 = vadd.f32 0.0, %v1263
    %v1265 = vpop.f32.mrf.mxu0
    %v1266 = vpop.f32.mrf.mxu0
    %v1267 = vadd.f32 0.0, %v1266
    %v1268 = vpop.f32.mrf.mxu0
    %1269 = vmatprep.mubr.bf16.mxu0 0
    %1270 = vmatmul.mubr.bf16.gmra.mxu0 %v1036
    %v1271 = vpop.f32.mrf.mxu0
    %v1272 = vadd.f32 0.0, %v1271
    %v1273 = vpop.f32.mrf.mxu0
    %v1274 = vpop.f32.mrf.mxu0
    %v1275 = vadd.f32 0.0, %v1274
    %v1276 = vpop.f32.mrf.mxu0
    %1277 = vdwg.mxu0
    %1278 = vmatprep.subr.bf16.mxu0 0
    %1279 = vmatpush1.bf16.msra.mxu0 %v185
    %1280 = vmatprep.subr.bf16.mxu0 0
    %1281 = vmatpush1.bf16.msra.mxu0 %v184
    %1282 = vmatprep.subr.bf16.mxu0 0
    %1283 = vmatpush1.bf16.msra.mxu0 %v183
    %1284 = vmatprep.subr.bf16.mxu0 0
    %1285 = vmatpush1.bf16.msra.mxu0 %v182
    %1286 = vmatprep.subr.bf16.mxu0 0
    %1287 = vmatpush1.bf16.msra.mxu0 %v181
    %1288 = vmatprep.subr.bf16.mxu0 0
    %1289 = vmatpush1.bf16.msra.mxu0 %v180
    %1290 = vmatprep.subr.bf16.mxu0 0
    %1291 = vmatpush1.bf16.msra.mxu0 %v179
    %1292 = vmatprep.subr.bf16.mxu0 0
    %1293 = vmatpush1.bf16.msra.mxu0 %v178
    %1294 = vmatprep.subr.bf16.mxu0 0
    %1295 = vmatpush2.bf16.msra.mxu0 0
    %1296 = vmatprep.subr.bf16.mxu0 0
    %1297 = vmatpush2.bf16.msra.mxu0 0
    %1298 = vmatprep.subr.bf16.mxu0 0
    %1299 = vmatpush2.bf16.msra.mxu0 0
    %1300 = vmatprep.subr.bf16.mxu0 0
    %1301 = vmatpush2.bf16.msra.mxu0 0
    %1302 = vmatprep.subr.bf16.mxu0 0
    %1303 = vmatpush2.bf16.msra.mxu0 0
    %1304 = vmatprep.subr.bf16.mxu0 0
    %1305 = vmatpush2.bf16.msra.mxu0 0
    %1306 = vmatprep.subr.bf16.mxu0 0
    %1307 = vmatpush2.bf16.msra.mxu0 0
    %1308 = vmatprep.subr.bf16.mxu0 0
    %1309 = vmatpush2.bf16.msra.mxu0 0
    %1310 = vmatprep.mubr.bf16.mxu0 0
    %1311 = vmatmul.mubr.bf16.gmra.mxu0 %v941
    %v1312 = vpop.f32.mrf.mxu0
    %v1313 = vadd.f32 %v1152, %v1312
    %v1314 = vpop.f32.mrf.mxu0
    %v1315 = vpop.f32.mrf.mxu0
    %v1316 = vadd.f32 %v1155, %v1315
    %v1317 = vpop.f32.mrf.mxu0
    %1318 = vmatprep.mubr.bf16.mxu0 0
    %1319 = vmatmul.mubr.bf16.gmra.mxu0 %v942
    %v1320 = vpop.f32.mrf.mxu0
    %v1321 = vadd.f32 %v1160, %v1320
    %v1322 = vpop.f32.mrf.mxu0
    %v1323 = vpop.f32.mrf.mxu0
    %v1324 = vadd.f32 %v1163, %v1323
    %v1325 = vpop.f32.mrf.mxu0
    %1326 = vmatprep.mubr.bf16.mxu0 0
    %1327 = vmatmul.mubr.bf16.gmra.mxu0 %v943
    %v1328 = vpop.f32.mrf.mxu0
    %v1329 = vadd.f32 %v1168, %v1328
    %v1330 = vpop.f32.mrf.mxu0
    %v1331 = vpop.f32.mrf.mxu0
    %v1332 = vadd.f32 %v1171, %v1331
    %v1333 = vpop.f32.mrf.mxu0
    %1334 = vmatprep.mubr.bf16.mxu0 0
    %1335 = vmatmul.mubr.bf16.gmra.mxu0 %v944
    %v1336 = vpop.f32.mrf.mxu0
    %v1337 = vadd.f32 %v1176, %v1336
    %v1338 = vpop.f32.mrf.mxu0
    %v1339 = vpop.f32.mrf.mxu0
    %v1340 = vadd.f32 %v1179, %v1339
    %v1341 = vpop.f32.mrf.mxu0
    %1342 = vmatprep.mubr.bf16.mxu0 0
    %1343 = vmatmul.mubr.bf16.gmra.mxu0 %v945
    %v1344 = vpop.f32.mrf.mxu0
    %v1345 = vadd.f32 %v1184, %v1344
    %v1346 = vpop.f32.mrf.mxu0
    %v1347 = vpop.f32.mrf.mxu0
    %v1348 = vadd.f32 %v1187, %v1347
    %v1349 = vpop.f32.mrf.mxu0
    %1350 = vmatprep.mubr.bf16.mxu0 0
    %1351 = vmatmul.mubr.bf16.gmra.mxu0 %v946
    %v1352 = vpop.f32.mrf.mxu0
    %v1353 = vadd.f32 %v1192, %v1352
    %v1354 = vpop.f32.mrf.mxu0
    %v1355 = vpop.f32.mrf.mxu0
    %v1356 = vadd.f32 %v1195, %v1355
    %v1357 = vpop.f32.mrf.mxu0
    %1358 = vmatprep.mubr.bf16.mxu0 0
    %1359 = vmatmul.mubr.bf16.gmra.mxu0 %v947
    %v1360 = vpop.f32.mrf.mxu0
    %v1361 = vadd.f32 %v1200, %v1360
    %v1362 = vpop.f32.mrf.mxu0
    %v1363 = vpop.f32.mrf.mxu0
    %v1364 = vadd.f32 %v1203, %v1363
    %v1365 = vpop.f32.mrf.mxu0
    %1366 = vmatprep.mubr.bf16.mxu0 0
    %1367 = vmatmul.mubr.bf16.gmra.mxu0 %v948
    %v1368 = vpop.f32.mrf.mxu0
    %v1369 = vadd.f32 %v1208, %v1368
    %v1370 = vpop.f32.mrf.mxu0
    %v1371 = vpop.f32.mrf.mxu0
    %v1372 = vadd.f32 %v1211, %v1371
    %v1373 = vpop.f32.mrf.mxu0
    %1374 = vmatprep.mubr.bf16.mxu0 0
    %1375 = vmatmul.mubr.bf16.gmra.mxu0 %v949
    %v1376 = vpop.f32.mrf.mxu0
    %v1377 = vadd.f32 %v1216, %v1376
    %v1378 = vpop.f32.mrf.mxu0
    %v1379 = vpop.f32.mrf.mxu0
    %v1380 = vadd.f32 %v1219, %v1379
    %v1381 = vpop.f32.mrf.mxu0
    %1382 = vmatprep.mubr.bf16.mxu0 0
    %1383 = vmatmul.mubr.bf16.gmra.mxu0 %v950
    %v1384 = vpop.f32.mrf.mxu0
    %v1385 = vadd.f32 %v1224, %v1384
    %v1386 = vpop.f32.mrf.mxu0
    %v1387 = vpop.f32.mrf.mxu0
    %v1388 = vadd.f32 %v1227, %v1387
    %v1389 = vpop.f32.mrf.mxu0
    %1390 = vmatprep.mubr.bf16.mxu0 0
    %1391 = vmatmul.mubr.bf16.gmra.mxu0 %v951
    %v1392 = vpop.f32.mrf.mxu0
    %v1393 = vadd.f32 %v1232, %v1392
    %v1394 = vpop.f32.mrf.mxu0
    %v1395 = vpop.f32.mrf.mxu0
    %v1396 = vadd.f32 %v1235, %v1395
    %v1397 = vpop.f32.mrf.mxu0
    %1398 = vmatprep.mubr.bf16.mxu0 0
    %1399 = vmatmul.mubr.bf16.gmra.mxu0 %v952
    %v1400 = vpop.f32.mrf.mxu0
    %v1401 = vadd.f32 %v1240, %v1400
    %v1402 = vpop.f32.mrf.mxu0
    %v1403 = vpop.f32.mrf.mxu0
    %v1404 = vadd.f32 %v1243, %v1403
    %v1405 = vpop.f32.mrf.mxu0
    %1406 = vmatprep.mubr.bf16.mxu0 0
    %1407 = vmatmul.mubr.bf16.gmra.mxu0 %v953
    %v1408 = vpop.f32.mrf.mxu0
    %v1409 = vadd.f32 %v1248, %v1408
    %v1410 = vpop.f32.mrf.mxu0
    %v1411 = vpop.f32.mrf.mxu0
    %v1412 = vadd.f32 %v1251, %v1411
    %v1413 = vpop.f32.mrf.mxu0
    %1414 = vmatprep.mubr.bf16.mxu0 0
    %1415 = vmatmul.mubr.bf16.gmra.mxu0 %v954
    %v1416 = vpop.f32.mrf.mxu0
    %v1417 = vadd.f32 %v1256, %v1416
    %v1418 = vpop.f32.mrf.mxu0
    %v1419 = vpop.f32.mrf.mxu0
    %v1420 = vadd.f32 %v1259, %v1419
    %v1421 = vpop.f32.mrf.mxu0
    %1422 = vmatprep.mubr.bf16.mxu0 0
    %1423 = vmatmul.mubr.bf16.gmra.mxu0 %v955
    %v1424 = vpop.f32.mrf.mxu0
    %v1425 = vadd.f32 %v1264, %v1424
    %v1426 = vpop.f32.mrf.mxu0
    %v1427 = vpop.f32.mrf.mxu0
    %v1428 = vadd.f32 %v1267, %v1427
    %v1429 = vpop.f32.mrf.mxu0
    %1430 = vmatprep.mubr.bf16.mxu0 0
    %1431 = vmatmul.mubr.bf16.gmra.mxu0 %v956
    %v1432 = vpop.f32.mrf.mxu0
    %v1433 = vadd.f32 %v1272, %v1432
    %v1434 = vpop.f32.mrf.mxu0
    %v1435 = vpop.f32.mrf.mxu0
    %v1436 = vadd.f32 %v1275, %v1435
    %v1437 = vpop.f32.mrf.mxu0
    %1438 = vdwg.mxu0
    %1439 = vmatprep.subr.bf16.mxu0 0
    %1440 = vmatpush1.bf16.msra.mxu0 %v185
    %1441 = vmatprep.subr.bf16.mxu0 0
    %1442 = vmatpush1.bf16.msra.mxu0 %v184
    %1443 = vmatprep.subr.bf16.mxu0 0
    %1444 = vmatpush1.bf16.msra.mxu0 %v183
    %1445 = vmatprep.subr.bf16.mxu0 0
    %1446 = vmatpush1.bf16.msra.mxu0 %v182
    %1447 = vmatprep.subr.bf16.mxu0 0
    %1448 = vmatpush1.bf16.msra.mxu0 %v181
    %1449 = vmatprep.subr.bf16.mxu0 0
    %1450 = vmatpush1.bf16.msra.mxu0 %v180
    %1451 = vmatprep.subr.bf16.mxu0 0
    %1452 = vmatpush1.bf16.msra.mxu0 %v179
    %1453 = vmatprep.subr.bf16.mxu0 0
    %1454 = vmatpush1.bf16.msra.mxu0 %v178
    %1455 = vmatprep.subr.bf16.mxu0 0
    %1456 = vmatpush2.bf16.msra.mxu0 0
    %1457 = vmatprep.subr.bf16.mxu0 0
    %1458 = vmatpush2.bf16.msra.mxu0 0
    %1459 = vmatprep.subr.bf16.mxu0 0
    %1460 = vmatpush2.bf16.msra.mxu0 0
    %1461 = vmatprep.subr.bf16.mxu0 0
    %1462 = vmatpush2.bf16.msra.mxu0 0
    %1463 = vmatprep.subr.bf16.mxu0 0
    %1464 = vmatpush2.bf16.msra.mxu0 0
    %1465 = vmatprep.subr.bf16.mxu0 0
    %1466 = vmatpush2.bf16.msra.mxu0 0
    %1467 = vmatprep.subr.bf16.mxu0 0
    %1468 = vmatpush2.bf16.msra.mxu0 0
    %1469 = vmatprep.subr.bf16.mxu0 0
    %1470 = vmatpush2.bf16.msra.mxu0 0
    %1471 = vmatprep.mubr.bf16.mxu0 0
    %1472 = vmatmul.mubr.bf16.gmra.mxu0 %v1101
    %v1473 = vpop.f32.mrf.mxu0
    %v1474 = vadd.f32 0.0, %v1473
    %v1475 = vpop.f32.mrf.mxu0
    %v1476 = vpop.f32.mrf.mxu0
    %v1477 = vadd.f32 0.0, %v1476
    %v1478 = vpop.f32.mrf.mxu0
    %1479 = vmatprep.mubr.bf16.mxu0 0
    %1480 = vmatmul.mubr.bf16.gmra.mxu0 %v1102
    %v1481 = vpop.f32.mrf.mxu0
    %v1482 = vadd.f32 0.0, %v1481
    %v1483 = vpop.f32.mrf.mxu0
    %v1484 = vpop.f32.mrf.mxu0
    %v1485 = vadd.f32 0.0, %v1484
    %v1486 = vpop.f32.mrf.mxu0
    %1487 = vmatprep.mubr.bf16.mxu0 0
    %1488 = vmatmul.mubr.bf16.gmra.mxu0 %v1103
    %v1489 = vpop.f32.mrf.mxu0
    %v1490 = vadd.f32 0.0, %v1489
    %v1491 = vpop.f32.mrf.mxu0
    %v1492 = vpop.f32.mrf.mxu0
    %v1493 = vadd.f32 0.0, %v1492
    %v1494 = vpop.f32.mrf.mxu0
    %1495 = vmatprep.mubr.bf16.mxu0 0
    %1496 = vmatmul.mubr.bf16.gmra.mxu0 %v1104
    %v1497 = vpop.f32.mrf.mxu0
    %v1498 = vadd.f32 0.0, %v1497
    %v1499 = vpop.f32.mrf.mxu0
    %v1500 = vpop.f32.mrf.mxu0
    %v1501 = vadd.f32 0.0, %v1500
    %v1502 = vpop.f32.mrf.mxu0
    %1503 = vmatprep.mubr.bf16.mxu0 0
    %1504 = vmatmul.mubr.bf16.gmra.mxu0 %v1105
    %v1505 = vpop.f32.mrf.mxu0
    %v1506 = vadd.f32 0.0, %v1505
    %v1507 = vpop.f32.mrf.mxu0
    %v1508 = vpop.f32.mrf.mxu0
    %v1509 = vadd.f32 0.0, %v1508
    %v1510 = vpop.f32.mrf.mxu0
    %1511 = vmatprep.mubr.bf16.mxu0 0
    %1512 = vmatmul.mubr.bf16.gmra.mxu0 %v1106
    %v1513 = vpop.f32.mrf.mxu0
    %v1514 = vadd.f32 0.0, %v1513
    %v1515 = vpop.f32.mrf.mxu0
    %v1516 = vpop.f32.mrf.mxu0
    %v1517 = vadd.f32 0.0, %v1516
    %v1518 = vpop.f32.mrf.mxu0
    %1519 = vmatprep.mubr.bf16.mxu0 0
    %1520 = vmatmul.mubr.bf16.gmra.mxu0 %v1107
    %v1521 = vpop.f32.mrf.mxu0
    %v1522 = vadd.f32 0.0, %v1521
    %v1523 = vpop.f32.mrf.mxu0
    %v1524 = vpop.f32.mrf.mxu0
    %v1525 = vadd.f32 0.0, %v1524
    %v1526 = vpop.f32.mrf.mxu0
    %1527 = vmatprep.mubr.bf16.mxu0 0
    %1528 = vmatmul.mubr.bf16.gmra.mxu0 %v1108
    %v1529 = vpop.f32.mrf.mxu0
    %v1530 = vadd.f32 0.0, %v1529
    %v1531 = vpop.f32.mrf.mxu0
    %v1532 = vpop.f32.mrf.mxu0
    %v1533 = vadd.f32 0.0, %v1532
    %v1534 = vpop.f32.mrf.mxu0
    %1535 = vmatprep.mubr.bf16.mxu0 0
    %1536 = vmatmul.mubr.bf16.gmra.mxu0 %v1109
    %v1537 = vpop.f32.mrf.mxu0
    %v1538 = vadd.f32 0.0, %v1537
    %v1539 = vpop.f32.mrf.mxu0
    %v1540 = vpop.f32.mrf.mxu0
    %v1541 = vadd.f32 0.0, %v1540
    %v1542 = vpop.f32.mrf.mxu0
    %1543 = vmatprep.mubr.bf16.mxu0 0
    %1544 = vmatmul.mubr.bf16.gmra.mxu0 %v1110
    %v1545 = vpop.f32.mrf.mxu0
    %v1546 = vadd.f32 0.0, %v1545
    %v1547 = vpop.f32.mrf.mxu0
    %v1548 = vpop.f32.mrf.mxu0
    %v1549 = vadd.f32 0.0, %v1548
    %v1550 = vpop.f32.mrf.mxu0
    %1551 = vmatprep.mubr.bf16.mxu0 0
    %1552 = vmatmul.mubr.bf16.gmra.mxu0 %v1111
    %v1553 = vpop.f32.mrf.mxu0
    %v1554 = vadd.f32 0.0, %v1553
    %v1555 = vpop.f32.mrf.mxu0
    %v1556 = vpop.f32.mrf.mxu0
    %v1557 = vadd.f32 0.0, %v1556
    %v1558 = vpop.f32.mrf.mxu0
    %1559 = vmatprep.mubr.bf16.mxu0 0
    %1560 = vmatmul.mubr.bf16.gmra.mxu0 %v1112
    %v1561 = vpop.f32.mrf.mxu0
    %v1562 = vadd.f32 0.0, %v1561
    %v1563 = vpop.f32.mrf.mxu0
    %v1564 = vpop.f32.mrf.mxu0
    %v1565 = vadd.f32 0.0, %v1564
    %v1566 = vpop.f32.mrf.mxu0
    %1567 = vmatprep.mubr.bf16.mxu0 0
    %1568 = vmatmul.mubr.bf16.gmra.mxu0 %v1113
    %v1569 = vpop.f32.mrf.mxu0
    %v1570 = vadd.f32 0.0, %v1569
    %v1571 = vpop.f32.mrf.mxu0
    %v1572 = vpop.f32.mrf.mxu0
    %v1573 = vadd.f32 0.0, %v1572
    %v1574 = vpop.f32.mrf.mxu0
    %1575 = vmatprep.mubr.bf16.mxu0 0
    %1576 = vmatmul.mubr.bf16.gmra.mxu0 %v1114
    %v1577 = vpop.f32.mrf.mxu0
    %v1578 = vadd.f32 0.0, %v1577
    %v1579 = vpop.f32.mrf.mxu0
    %v1580 = vpop.f32.mrf.mxu0
    %v1581 = vadd.f32 0.0, %v1580
    %v1582 = vpop.f32.mrf.mxu0
    %1583 = vmatprep.mubr.bf16.mxu0 0
    %1584 = vmatmul.mubr.bf16.gmra.mxu0 %v1115
    %v1585 = vpop.f32.mrf.mxu0
    %v1586 = vadd.f32 0.0, %v1585
    %v1587 = vpop.f32.mrf.mxu0
    %v1588 = vpop.f32.mrf.mxu0
    %v1589 = vadd.f32 0.0, %v1588
    %v1590 = vpop.f32.mrf.mxu0
    %1591 = vmatprep.mubr.bf16.mxu0 0
    %1592 = vmatmul.mubr.bf16.gmra.mxu0 %v1116
    %v1593 = vpop.f32.mrf.mxu0
    %v1594 = vadd.f32 0.0, %v1593
    %v1595 = vpop.f32.mrf.mxu0
    %v1596 = vpop.f32.mrf.mxu0
    %v1597 = vadd.f32 0.0, %v1596
    %v1598 = vpop.f32.mrf.mxu0
    %1599 = vdwg.mxu0
    %v1600 = vadd.f32 %v1313, %v1474
    %v1601 = vadd.f32 %v1316, %v1477
    %v1602 = vadd.f32 %v1321, %v1482
    %v1603 = vadd.f32 %v1324, %v1485
    %v1604 = vadd.f32 %v1329, %v1490
    %v1605 = vadd.f32 %v1332, %v1493
    %v1606 = vadd.f32 %v1337, %v1498
    %v1607 = vadd.f32 %v1340, %v1501
    %v1608 = vadd.f32 %v1345, %v1506
    %v1609 = vadd.f32 %v1348, %v1509
    %v1610 = vadd.f32 %v1353, %v1514
    %v1611 = vadd.f32 %v1356, %v1517
    %v1612 = vadd.f32 %v1361, %v1522
    %v1613 = vadd.f32 %v1364, %v1525
    %v1614 = vadd.f32 %v1369, %v1530
    %v1615 = vadd.f32 %v1372, %v1533
    %v1616 = vadd.f32 %v1377, %v1538
    %v1617 = vadd.f32 %v1380, %v1541
    %v1618 = vadd.f32 %v1385, %v1546
    %v1619 = vadd.f32 %v1388, %v1549
    %v1620 = vadd.f32 %v1393, %v1554
    %v1621 = vadd.f32 %v1396, %v1557
    %v1622 = vadd.f32 %v1401, %v1562
    %v1623 = vadd.f32 %v1404, %v1565
    %v1624 = vadd.f32 %v1409, %v1570
    %v1625 = vadd.f32 %v1412, %v1573
    %v1626 = vadd.f32 %v1417, %v1578
    %v1627 = vadd.f32 %v1420, %v1581
    %v1628 = vadd.f32 %v1425, %v1586
    %v1629 = vadd.f32 %v1428, %v1589
    %v1630 = vadd.f32 %v1433, %v1594
    %v1631 = vadd.f32 %v1436, %v1597
    %v1632 = vmax.f32 %v877, 1e-24
    %v1633 = vmax.f32 %v878, 1e-24
    %v1634 = vmax.f32 %v879, 1e-24
    %v1635 = vmax.f32 %v880, 1e-24
    %v1636 = vmax.f32 %v881, 1e-24
    %v1637 = vmax.f32 %v882, 1e-24
    %v1638 = vmax.f32 %v883, 1e-24
    %v1639 = vmax.f32 %v884, 1e-24
    %v1640 = vmax.f32 %v885, 1e-24
    %v1641 = vmax.f32 %v886, 1e-24
    %v1642 = vmax.f32 %v887, 1e-24
    %v1643 = vmax.f32 %v888, 1e-24
    %v1644 = vmax.f32 %v889, 1e-24
    %v1645 = vmax.f32 %v890, 1e-24
    %v1646 = vmax.f32 %v891, 1e-24
    %v1647 = vmax.f32 %v892, 1e-24
    %v1648 = vmax.f32 %v893, 1e-24
    %v1649 = vmax.f32 %v894, 1e-24
    %v1650 = vmax.f32 %v895, 1e-24
    %v1651 = vmax.f32 %v896, 1e-24
    %v1652 = vmax.f32 %v897, 1e-24
    %v1653 = vmax.f32 %v898, 1e-24
    %v1654 = vmax.f32 %v899, 1e-24
    %v1655 = vmax.f32 %v900, 1e-24
    %v1656 = vmax.f32 %v901, 1e-24
    %v1657 = vmax.f32 %v902, 1e-24
    %v1658 = vmax.f32 %v903, 1e-24
    %v1659 = vmax.f32 %v904, 1e-24
    %v1660 = vmax.f32 %v905, 1e-24
    %v1661 = vmax.f32 %v906, 1e-24
    %v1662 = vmax.f32 %v907, 1e-24
    %v1663 = vmax.f32 %v908, 1e-24
    %v1664 = vrsqrt.pop %v1632
    %v1665 = vrsqrt.pop %v1633
    %v1666 = vrsqrt.pop %v1634
    %v1667 = vrsqrt.pop %v1635
    %v1668 = vrsqrt.pop %v1636
    %v1669 = vrsqrt.pop %v1637
    %v1670 = vrsqrt.pop %v1638
    %v1671 = vrsqrt.pop %v1639
    %v1672 = vrsqrt.pop %v1640
    %v1673 = vrsqrt.pop %v1641
    %v1674 = vrsqrt.pop %v1642
    %v1675 = vrsqrt.pop %v1643
    %v1676 = vrsqrt.pop %v1644
    %v1677 = vrsqrt.pop %v1645
    %v1678 = vrsqrt.pop %v1646
    %v1679 = vrsqrt.pop %v1647
    %v1680 = vrsqrt.pop %v1648
    %v1681 = vrsqrt.pop %v1649
    %v1682 = vrsqrt.pop %v1650
    %v1683 = vrsqrt.pop %v1651
    %v1684 = vrsqrt.pop %v1652
    %v1685 = vrsqrt.pop %v1653
    %v1686 = vrsqrt.pop %v1654
    %v1687 = vrsqrt.pop %v1655
    %v1688 = vrsqrt.pop %v1656
    %v1689 = vrsqrt.pop %v1657
    %v1690 = vrsqrt.pop %v1658
    %v1691 = vrsqrt.pop %v1659
    %v1692 = vrsqrt.pop %v1660
    %v1693 = vrsqrt.pop %v1661
    %v1694 = vrsqrt.pop %v1662
    %v1695 = vrsqrt.pop %v1663
    %v1696 = vrsqrt.pop %v1600
    %v1697 = vmul.f32 %v1600, %v1696
    %vm1698 = vcmp.eq.f32.partialorder %v1600, inf
    %v1699 = vsel %vm1698, %v1600, %v1697
    %vm1700 = vcmp.eq.f32.partialorder %v1600, 0.0
    %v1701 = vand.u32 %v1600, 2147483648
    %v1702 = vsel %vm1700, %v1701, %v1699
    %v1703 = vrsqrt.pop %v1601
    %v1704 = vmul.f32 %v1601, %v1703
    %vm1705 = vcmp.eq.f32.partialorder %v1601, inf
    %v1706 = vsel %vm1705, %v1601, %v1704
    %vm1707 = vcmp.eq.f32.partialorder %v1601, 0.0
    %v1708 = vand.u32 %v1601, 2147483648
    %v1709 = vsel %vm1707, %v1708, %v1706
    %v1710 = vrsqrt.pop %v1602
    %v1711 = vmul.f32 %v1602, %v1710
    %vm1712 = vcmp.eq.f32.partialorder %v1602, inf
    %v1713 = vsel %vm1712, %v1602, %v1711
    %vm1714 = vcmp.eq.f32.partialorder %v1602, 0.0
    %v1715 = vand.u32 %v1602, 2147483648
    %v1716 = vsel %vm1714, %v1715, %v1713
    %v1717 = vrsqrt.pop %v1603
    %v1718 = vmul.f32 %v1603, %v1717
    %vm1719 = vcmp.eq.f32.partialorder %v1603, inf
    %v1720 = vsel %vm1719, %v1603, %v1718
    %vm1721 = vcmp.eq.f32.partialorder %v1603, 0.0
    %v1722 = vand.u32 %v1603, 2147483648
    %v1723 = vsel %vm1721, %v1722, %v1720
    %v1724 = vrsqrt.pop %v1604
    %v1725 = vmul.f32 %v1604, %v1724
    %vm1726 = vcmp.eq.f32.partialorder %v1604, inf
    %v1727 = vsel %vm1726, %v1604, %v1725
    %vm1728 = vcmp.eq.f32.partialorder %v1604, 0.0
    %v1729 = vand.u32 %v1604, 2147483648
    %v1730 = vsel %vm1728, %v1729, %v1727
    %v1731 = vrsqrt.pop %v1605
    %v1732 = vmul.f32 %v1605, %v1731
    %vm1733 = vcmp.eq.f32.partialorder %v1605, inf
    %v1734 = vsel %vm1733, %v1605, %v1732
    %vm1735 = vcmp.eq.f32.partialorder %v1605, 0.0
    %v1736 = vand.u32 %v1605, 2147483648
    %v1737 = vsel %vm1735, %v1736, %v1734
    %v1738 = vrsqrt.pop %v1606
    %v1739 = vmul.f32 %v1606, %v1738
    %vm1740 = vcmp.eq.f32.partialorder %v1606, inf
    %v1741 = vsel %vm1740, %v1606, %v1739
    %vm1742 = vcmp.eq.f32.partialorder %v1606, 0.0
    %v1743 = vand.u32 %v1606, 2147483648
    %v1744 = vsel %vm1742, %v1743, %v1741
    %v1745 = vrsqrt.pop %v1607
    %v1746 = vmul.f32 %v1607, %v1745
    %vm1747 = vcmp.eq.f32.partialorder %v1607, inf
    %v1748 = vsel %vm1747, %v1607, %v1746
    %vm1749 = vcmp.eq.f32.partialorder %v1607, 0.0
    %v1750 = vand.u32 %v1607, 2147483648
    %v1751 = vsel %vm1749, %v1750, %v1748
    %v1752 = vrsqrt.pop %v1608
    %v1753 = vmul.f32 %v1608, %v1752
    %vm1754 = vcmp.eq.f32.partialorder %v1608, inf
    %v1755 = vsel %vm1754, %v1608, %v1753
    %vm1756 = vcmp.eq.f32.partialorder %v1608, 0.0
    %v1757 = vand.u32 %v1608, 2147483648
    %v1758 = vsel %vm1756, %v1757, %v1755
    %v1759 = vrsqrt.pop %v1609
    %v1760 = vmul.f32 %v1609, %v1759
    %vm1761 = vcmp.eq.f32.partialorder %v1609, inf
    %v1762 = vsel %vm1761, %v1609, %v1760
    %vm1763 = vcmp.eq.f32.partialorder %v1609, 0.0
    %v1764 = vand.u32 %v1609, 2147483648
    %v1765 = vsel %vm1763, %v1764, %v1762
    %v1766 = vrsqrt.pop %v1610
    %v1767 = vmul.f32 %v1610, %v1766
    %vm1768 = vcmp.eq.f32.partialorder %v1610, inf
    %v1769 = vsel %vm1768, %v1610, %v1767
    %vm1770 = vcmp.eq.f32.partialorder %v1610, 0.0
    %v1771 = vand.u32 %v1610, 2147483648
    %v1772 = vsel %vm1770, %v1771, %v1769
    %v1773 = vrsqrt.pop %v1611
    %v1774 = vmul.f32 %v1611, %v1773
    %vm1775 = vcmp.eq.f32.partialorder %v1611, inf
    %v1776 = vsel %vm1775, %v1611, %v1774
    %vm1777 = vcmp.eq.f32.partialorder %v1611, 0.0
    %v1778 = vand.u32 %v1611, 2147483648
    %v1779 = vsel %vm1777, %v1778, %v1776
    %v1780 = vrsqrt.pop %v1612
    %v1781 = vmul.f32 %v1612, %v1780
    %vm1782 = vcmp.eq.f32.partialorder %v1612, inf
    %v1783 = vsel %vm1782, %v1612, %v1781
    %vm1784 = vcmp.eq.f32.partialorder %v1612, 0.0
    %v1785 = vand.u32 %v1612, 2147483648
    %v1786 = vsel %vm1784, %v1785, %v1783
    %v1787 = vrsqrt.pop %v1613
    %v1788 = vmul.f32 %v1613, %v1787
    %vm1789 = vcmp.eq.f32.partialorder %v1613, inf
    %v1790 = vsel %vm1789, %v1613, %v1788
    %vm1791 = vcmp.eq.f32.partialorder %v1613, 0.0
    %v1792 = vand.u32 %v1613, 2147483648
    %v1793 = vsel %vm1791, %v1792, %v1790
    %v1794 = vrsqrt.pop %v1614
    %v1795 = vmul.f32 %v1614, %v1794
    %vm1796 = vcmp.eq.f32.partialorder %v1614, inf
    %v1797 = vsel %vm1796, %v1614, %v1795
    %vm1798 = vcmp.eq.f32.partialorder %v1614, 0.0
    %v1799 = vand.u32 %v1614, 2147483648
    %v1800 = vsel %vm1798, %v1799, %v1797
    %v1801 = vrsqrt.pop %v1615
    %v1802 = vmul.f32 %v1615, %v1801
    %vm1803 = vcmp.eq.f32.partialorder %v1615, inf
    %v1804 = vsel %vm1803, %v1615, %v1802
    %vm1805 = vcmp.eq.f32.partialorder %v1615, 0.0
    %v1806 = vand.u32 %v1615, 2147483648
    %v1807 = vsel %vm1805, %v1806, %v1804
    %v1808 = vrsqrt.pop %v1616
    %v1809 = vmul.f32 %v1616, %v1808
    %vm1810 = vcmp.eq.f32.partialorder %v1616, inf
    %v1811 = vsel %vm1810, %v1616, %v1809
    %vm1812 = vcmp.eq.f32.partialorder %v1616, 0.0
    %v1813 = vand.u32 %v1616, 2147483648
    %v1814 = vsel %vm1812, %v1813, %v1811
    %v1815 = vrsqrt.pop %v1617
    %v1816 = vmul.f32 %v1617, %v1815
    %vm1817 = vcmp.eq.f32.partialorder %v1617, inf
    %v1818 = vsel %vm1817, %v1617, %v1816
    %vm1819 = vcmp.eq.f32.partialorder %v1617, 0.0
    %v1820 = vand.u32 %v1617, 2147483648
    %v1821 = vsel %vm1819, %v1820, %v1818
    %v1822 = vrsqrt.pop %v1618
    %v1823 = vmul.f32 %v1618, %v1822
    %vm1824 = vcmp.eq.f32.partialorder %v1618, inf
    %v1825 = vsel %vm1824, %v1618, %v1823
    %vm1826 = vcmp.eq.f32.partialorder %v1618, 0.0
    %v1827 = vand.u32 %v1618, 2147483648
    %v1828 = vsel %vm1826, %v1827, %v1825
    %v1829 = vrsqrt.pop %v1619
    %v1830 = vmul.f32 %v1619, %v1829
    %vm1831 = vcmp.eq.f32.partialorder %v1619, inf
    %v1832 = vsel %vm1831, %v1619, %v1830
    %vm1833 = vcmp.eq.f32.partialorder %v1619, 0.0
    %v1834 = vand.u32 %v1619, 2147483648
    %v1835 = vsel %vm1833, %v1834, %v1832
    %v1836 = vrsqrt.pop %v1620
    %v1837 = vmul.f32 %v1620, %v1836
    %vm1838 = vcmp.eq.f32.partialorder %v1620, inf
    %v1839 = vsel %vm1838, %v1620, %v1837
    %vm1840 = vcmp.eq.f32.partialorder %v1620, 0.0
    %v1841 = vand.u32 %v1620, 2147483648
    %v1842 = vsel %vm1840, %v1841, %v1839
    %v1843 = vrsqrt.pop %v1621
    %v1844 = vmul.f32 %v1621, %v1843
    %vm1845 = vcmp.eq.f32.partialorder %v1621, inf
    %v1846 = vsel %vm1845, %v1621, %v1844
    %vm1847 = vcmp.eq.f32.partialorder %v1621, 0.0
    %v1848 = vand.u32 %v1621, 2147483648
    %v1849 = vsel %vm1847, %v1848, %v1846
    %v1850 = vrsqrt.pop %v1622
    %v1851 = vmul.f32 %v1622, %v1850
    %vm1852 = vcmp.eq.f32.partialorder %v1622, inf
    %v1853 = vsel %vm1852, %v1622, %v1851
    %vm1854 = vcmp.eq.f32.partialorder %v1622, 0.0
    %v1855 = vand.u32 %v1622, 2147483648
    %v1856 = vsel %vm1854, %v1855, %v1853
    %v1857 = vrsqrt.pop %v1623
    %v1858 = vmul.f32 %v1623, %v1857
    %vm1859 = vcmp.eq.f32.partialorder %v1623, inf
    %v1860 = vsel %vm1859, %v1623, %v1858
    %vm1861 = vcmp.eq.f32.partialorder %v1623, 0.0
    %v1862 = vand.u32 %v1623, 2147483648
    %v1863 = vsel %vm1861, %v1862, %v1860
    %v1864 = vrsqrt.pop %v1624
    %v1865 = vmul.f32 %v1624, %v1864
    %vm1866 = vcmp.eq.f32.partialorder %v1624, inf
    %v1867 = vsel %vm1866, %v1624, %v1865
    %vm1868 = vcmp.eq.f32.partialorder %v1624, 0.0
    %v1869 = vand.u32 %v1624, 2147483648
    %v1870 = vsel %vm1868, %v1869, %v1867
    %v1871 = vrsqrt.pop %v1625
    %v1872 = vmul.f32 %v1625, %v1871
    %vm1873 = vcmp.eq.f32.partialorder %v1625, inf
    %v1874 = vsel %vm1873, %v1625, %v1872
    %vm1875 = vcmp.eq.f32.partialorder %v1625, 0.0
    %v1876 = vand.u32 %v1625, 2147483648
    %v1877 = vsel %vm1875, %v1876, %v1874
    %v1878 = vrsqrt.pop %v1626
    %v1879 = vmul.f32 %v1626, %v1878
    %vm1880 = vcmp.eq.f32.partialorder %v1626, inf
    %v1881 = vsel %vm1880, %v1626, %v1879
    %vm1882 = vcmp.eq.f32.partialorder %v1626, 0.0
    %v1883 = vand.u32 %v1626, 2147483648
    %v1884 = vsel %vm1882, %v1883, %v1881
    %v1885 = vrsqrt.pop %v1627
    %v1886 = vmul.f32 %v1627, %v1885
    %vm1887 = vcmp.eq.f32.partialorder %v1627, inf
    %v1888 = vsel %vm1887, %v1627, %v1886
    %vm1889 = vcmp.eq.f32.partialorder %v1627, 0.0
    %v1890 = vand.u32 %v1627, 2147483648
    %v1891 = vsel %vm1889, %v1890, %v1888
    %v1892 = vrsqrt.pop %v1628
    %v1893 = vmul.f32 %v1628, %v1892
    %vm1894 = vcmp.eq.f32.partialorder %v1628, inf
    %v1895 = vsel %vm1894, %v1628, %v1893
    %vm1896 = vcmp.eq.f32.partialorder %v1628, 0.0
    %v1897 = vand.u32 %v1628, 2147483648
    %v1898 = vsel %vm1896, %v1897, %v1895
    %v1899 = vrsqrt.pop %v1629
    %v1900 = vmul.f32 %v1629, %v1899
    %vm1901 = vcmp.eq.f32.partialorder %v1629, inf
    %v1902 = vsel %vm1901, %v1629, %v1900
    %vm1903 = vcmp.eq.f32.partialorder %v1629, 0.0
    %v1904 = vand.u32 %v1629, 2147483648
    %v1905 = vsel %vm1903, %v1904, %v1902
    %v1906 = vrsqrt.pop %v1630
    %v1907 = vmul.f32 %v1630, %v1906
    %vm1908 = vcmp.eq.f32.partialorder %v1630, inf
    %v1909 = vsel %vm1908, %v1630, %v1907
    %vm1910 = vcmp.eq.f32.partialorder %v1630, 0.0
    %v1911 = vand.u32 %v1630, 2147483648
    %v1912 = vsel %vm1910, %v1911, %v1909
    %v1913 = vrsqrt.pop %v1631
    %v1914 = vmul.f32 %v1631, %v1913
    %vm1915 = vcmp.eq.f32.partialorder %v1631, inf
    %v1916 = vsel %vm1915, %v1631, %v1914
    %vm1917 = vcmp.eq.f32.partialorder %v1631, 0.0
    %v1918 = vand.u32 %v1631, 2147483648
    %v1919 = vsel %vm1917, %v1918, %v1916
    %v1920 = vmul.f32 %v1702, %v1664
    %v1921 = vmul.f32 %v1709, %v1665
    %v1922 = vmul.f32 %v1716, %v1666
    %v1923 = vmul.f32 %v1723, %v1667
    %v1924 = vmul.f32 %v1730, %v1668
    %v1925 = vmul.f32 %v1737, %v1669
    %v1926 = vmul.f32 %v1744, %v1670
    %v1927 = vmul.f32 %v1751, %v1671
    %v1928 = vmul.f32 %v1758, %v1672
    %v1929 = vmul.f32 %v1765, %v1673
    %v1930 = vmul.f32 %v1772, %v1674
    %v1931 = vmul.f32 %v1779, %v1675
    %v1932 = vmul.f32 %v1786, %v1676
    %v1933 = vmul.f32 %v1793, %v1677
    %v1934 = vmul.f32 %v1800, %v1678
    %v1935 = vmul.f32 %v1807, %v1679
    %v1936 = vmul.f32 %v1814, %v1680
    %v1937 = vmul.f32 %v1821, %v1681
    %v1938 = vmul.f32 %v1828, %v1682
    %v1939 = vmul.f32 %v1835, %v1683
    %v1940 = vmul.f32 %v1842, %v1684
    %v1941 = vmul.f32 %v1849, %v1685
    %v1942 = vmul.f32 %v1856, %v1686
    %v1943 = vmul.f32 %v1863, %v1687
    %v1944 = vmul.f32 %v1870, %v1688
    %v1945 = vmul.f32 %v1877, %v1689
    %v1946 = vmul.f32 %v1884, %v1690
    %v1947 = vmul.f32 %v1891, %v1691
    %v1948 = vmul.f32 %v1898, %v1692
    %v1949 = vmul.f32 %v1905, %v1693
    %v1950 = vmul.f32 %v1912, %v1694
    %v1951 = vmul.f32 %v1919, %v1695
    %v1952 = vstv %s109
    %v1953 = vmul.f32 %v1920, %v1952
    %v1954 = vmul.f32 %v1921, %v1952
    %v1955 = vmul.f32 %v1922, %v1952
    %v1956 = vmul.f32 %v1923, %v1952
    %v1957 = vmul.f32 %v1924, %v1952
    %v1958 = vmul.f32 %v1925, %v1952
    %v1959 = vmul.f32 %v1926, %v1952
    %v1960 = vmul.f32 %v1927, %v1952
    %v1961 = vmul.f32 %v1928, %v1952
    %v1962 = vmul.f32 %v1929, %v1952
    %v1963 = vmul.f32 %v1930, %v1952
    %v1964 = vmul.f32 %v1931, %v1952
    %v1965 = vmul.f32 %v1932, %v1952
    %v1966 = vmul.f32 %v1933, %v1952
    %v1967 = vmul.f32 %v1934, %v1952
    %v1968 = vmul.f32 %v1935, %v1952
    %v1969 = vmul.f32 %v1936, %v1952
    %v1970 = vmul.f32 %v1937, %v1952
    %v1971 = vmul.f32 %v1938, %v1952
    %v1972 = vmul.f32 %v1939, %v1952
    %v1973 = vmul.f32 %v1940, %v1952
    %v1974 = vmul.f32 %v1941, %v1952
    %v1975 = vmul.f32 %v1942, %v1952
    %v1976 = vmul.f32 %v1943, %v1952
    %v1977 = vmul.f32 %v1944, %v1952
    %v1978 = vmul.f32 %v1945, %v1952
    %v1979 = vmul.f32 %v1946, %v1952
    %v1980 = vmul.f32 %v1947, %v1952
    %v1981 = vmul.f32 %v1948, %v1952
    %v1982 = vmul.f32 %v1949, %v1952
    %v1983 = vmul.f32 %v1950, %v1952
    %v1984 = vmul.f32 %v1951, %v1952
    %v1985 = vmul.f32 %v45, %v1953
    %v1986 = vmul.f32 %v46, %v1954
    %v1987 = vmul.f32 %v47, %v1955
    %v1988 = vmul.f32 %v48, %v1956
    %v1989 = vmul.f32 %v49, %v1957
    %v1990 = vmul.f32 %v50, %v1958
    %v1991 = vmul.f32 %v51, %v1959
    %v1992 = vmul.f32 %v52, %v1960
    %v1993 = vmul.f32 %v53, %v1961
    %v1994 = vmul.f32 %v54, %v1962
    %v1995 = vmul.f32 %v55, %v1963
    %v1996 = vmul.f32 %v56, %v1964
    %v1997 = vmul.f32 %v57, %v1965
    %v1998 = vmul.f32 %v58, %v1966
    %v1999 = vmul.f32 %v59, %v1967
    %v2000 = vmul.f32 %v60, %v1968
    %v2001 = vmul.f32 %v61, %v1969
    %v2002 = vmul.f32 %v62, %v1970
    %v2003 = vmul.f32 %v63, %v1971
    %v2004 = vmul.f32 %v64, %v1972
    %v2005 = vmul.f32 %v65, %v1973
    %v2006 = vmul.f32 %v66, %v1974
    %v2007 = vmul.f32 %v67, %v1975
    %v2008 = vmul.f32 %v68, %v1976
    %v2009 = vmul.f32 %v69, %v1977
    %v2010 = vmul.f32 %v70, %v1978
    %v2011 = vmul.f32 %v71, %v1979
    %v2012 = vmul.f32 %v72, %v1980
    %v2013 = vmul.f32 %v73, %v1981
    %v2014 = vmul.f32 %v74, %v1982
    %v2015 = vmul.f32 %v75, %v1983
    %v2016 = vmul.f32 %v76, %v1984
    %2017 = vst [vmem:[#allocation8] sm:$0xff] %v1985
    %2018 = vst [vmem:[#allocation8 + $0x8] sm:$0xff] %v1986
    %2019 = vst [vmem:[#allocation8 + $0x10] sm:$0xff] %v1987
    %2020 = vst [vmem:[#allocation8 + $0x18] sm:$0xff] %v1988
    %2021 = vst [vmem:[#allocation8 + $0x20] sm:$0xff] %v1989
    %2022 = vst [vmem:[#allocation8 + $0x28] sm:$0xff] %v1990
    %2023 = vst [vmem:[#allocation8 + $0x30] sm:$0xff] %v1991
    %2024 = vst [vmem:[#allocation8 + $0x38] sm:$0xff] %v1992
    %2025 = vst [vmem:[#allocation8 + $0x40] sm:$0xff] %v1993
    %2026 = vst [vmem:[#allocation8 + $0x48] sm:$0xff] %v1994
    %2027 = vst [vmem:[#allocation8 + $0x50] sm:$0xff] %v1995
    %2028 = vst [vmem:[#allocation8 + $0x58] sm:$0xff] %v1996
    %2029 = vst [vmem:[#allocation8 + $0x60] sm:$0xff] %v1997
    %2030 = vst [vmem:[#allocation8 + $0x68] sm:$0xff] %v1998
    %2031 = vst [vmem:[#allocation8 + $0x70] sm:$0xff] %v1999
    %2032 = vst [vmem:[#allocation8 + $0x78] sm:$0xff] %v2000
    %2033 = vst [vmem:[#allocation8 + $0x80] sm:$0xff] %v2001
    %2034 = vst [vmem:[#allocation8 + $0x88] sm:$0xff] %v2002
    %2035 = vst [vmem:[#allocation8 + $0x90] sm:$0xff] %v2003
    %2036 = vst [vmem:[#allocation8 + $0x98] sm:$0xff] %v2004
    %2037 = vst [vmem:[#allocation8 + $0xa0] sm:$0xff] %v2005
    %2038 = vst [vmem:[#allocation8 + $0xa8] sm:$0xff] %v2006
    %2039 = vst [vmem:[#allocation8 + $0xb0] sm:$0xff] %v2007
    %2040 = vst [vmem:[#allocation8 + $0xb8] sm:$0xff] %v2008
    %2041 = vst [vmem:[#allocation8 + $0xc0] sm:$0xff] %v2009
    %2042 = vst [vmem:[#allocation8 + $0xc8] sm:$0xff] %v2010
    %2043 = vst [vmem:[#allocation8 + $0xd0] sm:$0xff] %v2011
    %2044 = vst [vmem:[#allocation8 + $0xd8] sm:$0xff] %v2012
    %2045 = vst [vmem:[#allocation8 + $0xe0] sm:$0xff] %v2013
    %2046 = vst [vmem:[#allocation8 + $0xe8] sm:$0xff] %v2014
    %2047 = vst [vmem:[#allocation8 + $0xf0] sm:$0xff] %v2015
    %2048 = vst [vmem:[#allocation8 + $0xf8] sm:$0xff] %v2016
    // Predicated region
    $region22: #{tpu_custom_call.1} parent=1 // pred_check
      _
    $region23: #{tpu_custom_call.1} parent=1 // pred_check_branch
      %2050 = sbr.rel (0) target = $region25
    $region24: #{tpu_custom_call.1} parent=1 // pred_region
      %s2052 = ssub.s32 4096, 4096
      %2053 = vsyncadd [#allocation5], %s2052
      %s2054 = sshll.u32 [#allocation8], 4
      %s2055 = int_to_ptr.vmem [resolvable:$true] %s2054
      %2060 = dma.vmem_to_hbm [thread:$0]  %s2055, 4096, %s3, [#allocation5], 128, 128, 8
    $region25: #{tpu_custom_call.1} parent=1 // pred_fallthru
      _
    // Predicated region
    $region26: #{tpu_custom_call.1} parent=1 // pred_check
      _
    $region27: #{tpu_custom_call.1} parent=1 // pred_check_branch
      %2062 = sbr.rel (0) target = $region29
    $region28: #{tpu_custom_call.1} parent=1 // pred_region
      %2063 = dma.done [#allocation5], 4096
    $region29: #{tpu_custom_call.1} parent=1 // pred_fallthru
      _
    %2064 = vsyncpa [#allocation4], 1
    %2065 = vsyncpa [#allocation7], 1
    %2066 = vsyncpa [#allocation5], 1

</llo_original>
